<compile_context>
chip_gen: v6e
topology: v6e:2x2x1
jax: 0.10.0
libtpu: 0.0.40
codegen_flags: <defaults>
</compile_context>

<pallas_src>
import functools

import jax
import jax.numpy as jnp
from jax.experimental import pallas as pl
from jax.experimental.pallas import tpu as pltpu


# ----------------------------------------------------------------------------
# Bilinear (align_corners=True) 1-D interpolation matrix, built in the wrapper.
# ----------------------------------------------------------------------------
def _interp_matrix(out_size, in_size):
    if in_size == 1:
        return jnp.ones((out_size, in_size), jnp.float32)
    if out_size == 1:
        return jax.nn.one_hot(jnp.zeros((out_size,), jnp.int32), in_size,
                              dtype=jnp.float32)
    i = jnp.arange(out_size, dtype=jnp.float32)
    src = i * (in_size - 1) / (out_size - 1)
    i0 = jnp.clip(jnp.floor(src).astype(jnp.int32), 0, in_size - 2)
    frac = src - i0.astype(jnp.float32)
    m0 = jax.nn.one_hot(i0, in_size, dtype=jnp.float32) * (1.0 - frac)[:, None]
    m1 = jax.nn.one_hot(i0 + 1, in_size, dtype=jnp.float32) * frac[:, None]
    return m0 + m1


# ----------------------------------------------------------------------------
# Fused kernel: instnorm+relu, Kronecker bilinear resize, channel concat (all
# in registers, lane-dense), 3x3 conv as 9 roll+mask accumulating matmuls.
# One batch element per grid step.
# ----------------------------------------------------------------------------
def _enc_dec_fusing_kernel(*refs, eps, resize, h, w):
    if resize:
        enc_ref, dec_ref, kron_ref, mask_ref, w_ref, b_ref, o_ref = refs
    else:
        enc_ref, dec_ref, mask_ref, w_ref, b_ref, o_ref = refs
    hw = h * w
    cout = o_ref.shape[1]
    inv_hw = 1.0 / float(hw)

    # ---- 1. InstanceNorm2d (biased var, eps) + ReLU, lane-dense, f32 math ---
    xe = enc_ref[0].astype(jnp.float32)                       # (C, H*W)
    mean = jnp.sum(xe, axis=-1, keepdims=True) * inv_hw       # (C, 1)
    xc = xe - mean
    var = jnp.sum(xc * xc, axis=-1, keepdims=True) * inv_hw   # (C, 1)
    enc_n = jnp.maximum(xc * jax.lax.rsqrt(var + eps), 0.0)   # (C, H*W)

    # ---- 2. bilinear upsample (align_corners=True) as ONE Kronecker matmul --
    xd = dec_ref[0].astype(jnp.float32)                       # (Cd, Hd*Wd)
    if resize:
        dec_r = jnp.dot(xd, kron_ref[...].astype(jnp.float32),
                        preferred_element_type=jnp.float32)   # (Cd, H*W)
    else:
        dec_r = xd                                            # (Cd, H*W)

    # ---- 3. channel concat, stays in registers (never touches VMEM/HBM) -----
    xf = jnp.concatenate([enc_n, dec_r], axis=0)              # (2C, H*W)

    # ---- 4. 3x3 conv (pad=1): 9 accumulating matmuls on roll+mask operands --
    acc = jnp.broadcast_to(b_ref[...].astype(jnp.float32), (cout, hw))
    t = 0
    for dy in (-1, 0, 1):
        for dx in (-1, 0, 1):
            off = dy * w + dx                                 # flat source shift
            if off == 0:
                shifted = xf
            else:
                # shifted[p] = xf[p + off]  (then mask zero-padding positions)
                shifted = pltpu.roll(xf, shift=(-off) % hw, axis=1)
                shifted = shifted * mask_ref[t]               # (1, H*W) bcast
            acc = acc + jnp.dot(w_ref[t].astype(jnp.float32), shifted,
                                preferred_element_type=jnp.float32)
            t += 1
    o_ref[0] = acc.astype(o_ref.dtype)                        # lane-dense store


# ----------------------------------------------------------------------------
# EncDecFusing forward (wrapper): only free reshapes / tiny constant tables are
# built outside the kernel; activations go HBM -> kernel -> HBM exactly once.
# ----------------------------------------------------------------------------
def enc_dec_fusing(enc_fea, dec_fea, conv_weight, conv_bias, eps=1e-5):
    n, c, h, w = enc_fea.shape
    _, cd, hd, wd = dec_fea.shape
    cout = conv_weight.shape[0]
    cin2 = c + cd
    hw = h * w
    resize = (hd != h)                       # same test as the PyTorch module
    if not resize and wd != w:
        raise ValueError("dec_fea width must match enc_fea when heights match "
                         "(mirrors the PyTorch module's behaviour)")

    enc2d = enc_fea.reshape(n, c, hw)                        # free, contiguous
    dec2d = dec_fea.reshape(n, cd, hd * wd)

    # Per-tap zero-padding validity masks (9, 1, H*W), resident in VMEM.
    yy = jnp.repeat(jnp.arange(h), w).reshape(1, hw)         # p // W
    xx = jnp.tile(jnp.arange(w), h).reshape(1, hw)           # p %  W
    masks = []
    for dy in (-1, 0, 1):
        for dx in (-1, 0, 1):
            m = jnp.ones((1, hw), jnp.float32)
            if dy == -1:
                m = m * (yy >= 1)
            elif dy == 1:
                m = m * (yy <= h - 2)
            if dx == -1:
                m = m * (xx >= 1)
            elif dx == 1:
                m = m * (xx <= w - 2)
            masks.append(m)
    tap_mask = jnp.stack(masks, axis=0)                      # (9, 1, H*W) f32

    # (Cout, 2C, 3, 3) -> (9, Cout, 2C); tap order (dy, dx) matches the kernel.
    w9 = jnp.transpose(conv_weight, (2, 3, 0, 1)).reshape(9, cout, cin2)
    b2d = conv_bias.reshape(cout, 1).astype(jnp.float32)

    args = [enc2d, dec2d]
    in_specs = [
        pl.BlockSpec((1, c, hw), lambda i: (i, 0, 0)),
        pl.BlockSpec((1, cd, hd * wd), lambda i: (i, 0, 0)),
    ]
    if resize:
        # Kronecker bilinear-resize matrix: (Hd*Wd, H*W), resident weight.
        kron = jnp.kron(_interp_matrix(h, hd), _interp_matrix(w, wd)).T
        args.append(kron)
        in_specs.append(pl.BlockSpec((hd * wd, hw), lambda i: (0, 0)))
    args += [tap_mask, w9, b2d]
    in_specs += [
        pl.BlockSpec((9, 1, hw), lambda i: (0, 0, 0)),
        pl.BlockSpec((9, cout, cin2), lambda i: (0, 0, 0)),
        pl.BlockSpec((cout, 1), lambda i: (0, 0)),
    ]

    kernel = functools.partial(_enc_dec_fusing_kernel,
                               eps=eps, resize=resize, h=h, w=w)
    out = pl.pallas_call(
        kernel,
        out_shape=jax.ShapeDtypeStruct((n, cout, hw), enc_fea.dtype),
        grid=(n,),
        in_specs=in_specs,
        out_specs=pl.BlockSpec((1, cout, hw), lambda i: (i, 0, 0)),
        compiler_params=pltpu.CompilerParams(
            dimension_semantics=("parallel",)),
    )(*args)
    return out.reshape(n, cout, h, w)                        # free metadata reshape


# ----------------------------------------------------------------------------
# Pure-JAX reference for verification
# ----------------------------------------------------------------------------
def reference(enc, dec, w, b, eps=1e-5):
    mean = enc.mean(axis=(2, 3), keepdims=True)
    var = ((enc - mean) ** 2).mean(axis=(2, 3), keepdims=True)
    encn = jnp.maximum((enc - mean) / jnp.sqrt(var + eps), 0.0)
    if dec.shape[2] != encn.shape[2]:
        rh = _interp_matrix(encn.shape[2], dec.shape[2])
        rw = _interp_matrix(encn.shape[3], dec.shape[3])
        dec = jnp.einsum("hk,nckw->nchw", rh, dec)
        dec = jnp.einsum("wl,nchl->nchw", rw, dec)
    x = jnp.concatenate([encn, dec], axis=1)
    out = jax.lax.conv_general_dilated(
        x, w, window_strides=(1, 1), padding="SAME",
        dimension_numbers=("NCHW", "OIHW", "NCHW"))
    return out + b[None, :, None, None]


if __name__ == "__main__":
    N, C, H, W = 2, 4, 16, 16
    Hd, Wd = 8, 8

    key = jax.random.PRNGKey(0)
    k_enc, k_dec, k_w, k_b = jax.random.split(key, 4)
    enc_fea = jax.random.normal(k_enc, (N, C, H, W), dtype=jnp.float32)
    dec_fea = jax.random.normal(k_dec, (N, C, Hd, Wd), dtype=jnp.float32)
    # Conv2d(2C -> C, 3x3), OIHW weight + bias.
    conv_w = 0.1 * jax.random.normal(k_w, (C, 2 * C, 3, 3), dtype=jnp.float32)
    conv_b = 0.1 * jax.random.normal(k_b, (C,), dtype=jnp.float32)

    out = jax.block_until_ready(enc_dec_fusing(enc_fea, dec_fea, conv_w, conv_b))
    ref = jax.block_until_ready(reference(enc_fea, dec_fea, conv_w, conv_b))

    assert out.shape == (N, C, H, W), out.shape
    assert jnp.allclose(out, ref, atol=1e-3, rtol=1e-3), \
        float(jnp.max(jnp.abs(out - ref)))
    print("KERNEL_OK")
</pallas_src>

<mosaic_0001>
module attributes {stable_mosaic.version = 11 : i64} {
  func.func @_enc_dec_fusing_kernel(%arg0: i32, %arg1: memref<1x4x256xf32, #tpu.memory_space<vmem>>, %arg2: memref<1x4x64xf32, #tpu.memory_space<vmem>>, %arg3: memref<64x256xf32, #tpu.memory_space<vmem>>, %arg4: memref<9x1x256xf32, #tpu.memory_space<vmem>>, %arg5: memref<9x4x8xf32, #tpu.memory_space<vmem>>, %arg6: memref<4x1xf32, #tpu.memory_space<vmem>>, %arg7: memref<1x4x256xf32, #tpu.memory_space<vmem>>) attributes {dimension_semantics = [#tpu.dimension_semantics<parallel>], iteration_bounds = array<i64: 2>, scalar_prefetch = 0 : i64, scratch_operands = 0 : i64, tpu.core_type = #tpu.core_type<tc>, window_params = [{transform_indices = @transform_0, window_bounds = array<i64: 1, 4, 256>}, {transform_indices = @transform_1, window_bounds = array<i64: 1, 4, 64>}, {pipeline_mode = #tpu.pipeline_mode<synchronous>, transform_indices = @transform_2, window_bounds = array<i64: 64, 256>}, {pipeline_mode = #tpu.pipeline_mode<synchronous>, transform_indices = @transform_3, window_bounds = array<i64: 9, 1, 256>}, {pipeline_mode = #tpu.pipeline_mode<synchronous>, transform_indices = @transform_4, window_bounds = array<i64: 9, 4, 8>}, {pipeline_mode = #tpu.pipeline_mode<synchronous>, transform_indices = @transform_5, window_bounds = array<i64: 4, 1>}, {transform_indices = @transform_6, window_bounds = array<i64: 1, 4, 256>}]} {
    %c0 = arith.constant 0 : index
    %c0_0 = arith.constant 0 : index
    %c0_1 = arith.constant 0 : index
    %0 = vector.load %arg1[%c0, %c0_0, %c0_1] : memref<1x4x256xf32, #tpu.memory_space<vmem>>, vector<1x4x256xf32>
    %1 = vector.shape_cast %0 : vector<1x4x256xf32> to vector<4x256xf32>
    %cst = arith.constant dense<0.000000e+00> : vector<4xf32>
    %2 = vector.multi_reduction <add>, %1, %cst [1] : vector<4x256xf32> to vector<4xf32>
    %3 = vector.shape_cast %2 : vector<4xf32> to vector<4x1xf32>
    %cst_2 = arith.constant 3.906250e-03 : f32
    %4 = vector.broadcast %cst_2 : f32 to vector<4x1xf32>
    %5 = arith.mulf %3, %4 : vector<4x1xf32>
    %6 = vector.broadcast %5 : vector<4x1xf32> to vector<4x256xf32>
    %7 = arith.subf %1, %6 : vector<4x256xf32>
    %8 = arith.mulf %7, %7 : vector<4x256xf32>
    %cst_3 = arith.constant dense<0.000000e+00> : vector<4xf32>
    %9 = vector.multi_reduction <add>, %8, %cst_3 [1] : vector<4x256xf32> to vector<4xf32>
    %10 = vector.shape_cast %9 : vector<4xf32> to vector<4x1xf32>
    %cst_4 = arith.constant 3.906250e-03 : f32
    %11 = vector.broadcast %cst_4 : f32 to vector<4x1xf32>
    %12 = arith.mulf %10, %11 : vector<4x1xf32>
    %cst_5 = arith.constant 9.99999974E-6 : f32
    %13 = vector.broadcast %cst_5 : f32 to vector<4x1xf32>
    %14 = arith.addf %12, %13 : vector<4x1xf32>
    %15 = math.rsqrt %14 : vector<4x1xf32>
    %16 = vector.broadcast %15 : vector<4x1xf32> to vector<4x256xf32>
    %17 = arith.mulf %7, %16 : vector<4x256xf32>
    %cst_6 = arith.constant 0.000000e+00 : f32
    %18 = vector.broadcast %cst_6 : f32 to vector<4x256xf32>
    %19 = arith.maximumf %17, %18 : vector<4x256xf32>
    %c0_7 = arith.constant 0 : index
    %c0_8 = arith.constant 0 : index
    %c0_9 = arith.constant 0 : index
    %20 = vector.load %arg2[%c0_7, %c0_8, %c0_9] : memref<1x4x64xf32, #tpu.memory_space<vmem>>, vector<1x4x64xf32>
    %21 = vector.shape_cast %20 : vector<1x4x64xf32> to vector<4x64xf32>
    %c0_10 = arith.constant 0 : index
    %c0_11 = arith.constant 0 : index
    %22 = vector.load %arg3[%c0_10, %c0_11] : memref<64x256xf32, #tpu.memory_space<vmem>>, vector<64x256xf32>
    %cst_12 = arith.constant dense<0.000000e+00> : vector<4x256xf32>
    %23 = tpu.matmul %21, %22, %cst_12 {dimension_numbers = #tpu.dot_dimension_numbers<[1], [0], [0], [1], [0, 0, 1, 1], [], []>} : vector<4x64xf32>, vector<64x256xf32>, vector<4x256xf32> -> vector<4x256xf32>
    %24 = tpu.concatenate %19, %23 in 0 : vector<4x256xf32>, vector<4x256xf32> -> vector<8x256xf32>
    %c0_13 = arith.constant 0 : index
    %c0_14 = arith.constant 0 : index
    %25 = vector.load %arg6[%c0_13, %c0_14] : memref<4x1xf32, #tpu.memory_space<vmem>>, vector<4x1xf32>
    %26 = vector.shape_cast %25 : vector<4x1xf32> to vector<4x1xf32>
    %27 = vector.broadcast %26 : vector<4x1xf32> to vector<4x256xf32>
    %c17_i32 = arith.constant 17 : i32
    %28 = tpu.dynamic_rotate %24 by %c17_i32 dim 1 : vector<8x256xf32>, i32 -> vector<8x256xf32>
    %c0_15 = arith.constant 0 : index
    %c0_16 = arith.constant 0 : index
    %c0_17 = arith.constant 0 : index
    %29 = vector.load %arg4[%c0_15, %c0_16, %c0_17] : memref<9x1x256xf32, #tpu.memory_space<vmem>>, vector<1x1x256xf32>
    %30 = vector.shape_cast %29 : vector<1x1x256xf32> to vector<1x256xf32>
    %31 = vector.broadcast %30 : vector<1x256xf32> to vector<8x256xf32>
    %32 = arith.mulf %28, %31 : vector<8x256xf32>
    %c0_18 = arith.constant 0 : index
    %c0_19 = arith.constant 0 : index
    %c0_20 = arith.constant 0 : index
    %33 = vector.load %arg5[%c0_18, %c0_19, %c0_20] : memref<9x4x8xf32, #tpu.memory_space<vmem>>, vector<1x4x8xf32>
    %34 = vector.shape_cast %33 : vector<1x4x8xf32> to vector<4x8xf32>
    %cst_21 = arith.constant dense<0.000000e+00> : vector<4x256xf32>
    %35 = tpu.matmul %34, %32, %cst_21 {dimension_numbers = #tpu.dot_dimension_numbers<[1], [0], [0], [1], [0, 0, 1, 1], [], []>} : vector<4x8xf32>, vector<8x256xf32>, vector<4x256xf32> -> vector<4x256xf32>
    %36 = arith.addf %27, %35 : vector<4x256xf32>
    %c16_i32 = arith.constant 16 : i32
    %37 = tpu.dynamic_rotate %24 by %c16_i32 dim 1 : vector<8x256xf32>, i32 -> vector<8x256xf32>
    %c1 = arith.constant 1 : index
    %c0_22 = arith.constant 0 : index
    %c0_23 = arith.constant 0 : index
    %38 = vector.load %arg4[%c1, %c0_22, %c0_23] : memref<9x1x256xf32, #tpu.memory_space<vmem>>, vector<1x1x256xf32>
    %39 = vector.shape_cast %38 : vector<1x1x256xf32> to vector<1x256xf32>
    %40 = vector.broadcast %39 : vector<1x256xf32> to vector<8x256xf32>
    %41 = arith.mulf %37, %40 : vector<8x256xf32>
    %c1_24 = arith.constant 1 : index
    %c0_25 = arith.constant 0 : index
    %c0_26 = arith.constant 0 : index
    %42 = vector.load %arg5[%c1_24, %c0_25, %c0_26] : memref<9x4x8xf32, #tpu.memory_space<vmem>>, vector<1x4x8xf32>
    %43 = vector.shape_cast %42 : vector<1x4x8xf32> to vector<4x8xf32>
    %cst_27 = arith.constant dense<0.000000e+00> : vector<4x256xf32>
    %44 = tpu.matmul %43, %41, %cst_27 {dimension_numbers = #tpu.dot_dimension_numbers<[1], [0], [0], [1], [0, 0, 1, 1], [], []>} : vector<4x8xf32>, vector<8x256xf32>, vector<4x256xf32> -> vector<4x256xf32>
    %45 = arith.addf %36, %44 : vector<4x256xf32>
    %c15_i32 = arith.constant 15 : i32
    %46 = tpu.dynamic_rotate %24 by %c15_i32 dim 1 : vector<8x256xf32>, i32 -> vector<8x256xf32>
    %c2 = arith.constant 2 : index
    %c0_28 = arith.constant 0 : index
    %c0_29 = arith.constant 0 : index
    %47 = vector.load %arg4[%c2, %c0_28, %c0_29] : memref<9x1x256xf32, #tpu.memory_space<vmem>>, vector<1x1x256xf32>
    %48 = vector.shape_cast %47 : vector<1x1x256xf32> to vector<1x256xf32>
    %49 = vector.broadcast %48 : vector<1x256xf32> to vector<8x256xf32>
    %50 = arith.mulf %46, %49 : vector<8x256xf32>
    %c2_30 = arith.constant 2 : index
    %c0_31 = arith.constant 0 : index
    %c0_32 = arith.constant 0 : index
    %51 = vector.load %arg5[%c2_30, %c0_31, %c0_32] : memref<9x4x8xf32, #tpu.memory_space<vmem>>, vector<1x4x8xf32>
    %52 = vector.shape_cast %51 : vector<1x4x8xf32> to vector<4x8xf32>
    %cst_33 = arith.constant dense<0.000000e+00> : vector<4x256xf32>
    %53 = tpu.matmul %52, %50, %cst_33 {dimension_numbers = #tpu.dot_dimension_numbers<[1], [0], [0], [1], [0, 0, 1, 1], [], []>} : vector<4x8xf32>, vector<8x256xf32>, vector<4x256xf32> -> vector<4x256xf32>
    %54 = arith.addf %45, %53 : vector<4x256xf32>
    %c1_i32 = arith.constant 1 : i32
    %55 = tpu.dynamic_rotate %24 by %c1_i32 dim 1 : vector<8x256xf32>, i32 -> vector<8x256xf32>
    %c3 = arith.constant 3 : index
    %c0_34 = arith.constant 0 : index
    %c0_35 = arith.constant 0 : index
    %56 = vector.load %arg4[%c3, %c0_34, %c0_35] : memref<9x1x256xf32, #tpu.memory_space<vmem>>, vector<1x1x256xf32>
    %57 = vector.shape_cast %56 : vector<1x1x256xf32> to vector<1x256xf32>
    %58 = vector.broadcast %57 : vector<1x256xf32> to vector<8x256xf32>
    %59 = arith.mulf %55, %58 : vector<8x256xf32>
    %c3_36 = arith.constant 3 : index
    %c0_37 = arith.constant 0 : index
    %c0_38 = arith.constant 0 : index
    %60 = vector.load %arg5[%c3_36, %c0_37, %c0_38] : memref<9x4x8xf32, #tpu.memory_space<vmem>>, vector<1x4x8xf32>
    %61 = vector.shape_cast %60 : vector<1x4x8xf32> to vector<4x8xf32>
    %cst_39 = arith.constant dense<0.000000e+00> : vector<4x256xf32>
    %62 = tpu.matmul %61, %59, %cst_39 {dimension_numbers = #tpu.dot_dimension_numbers<[1], [0], [0], [1], [0, 0, 1, 1], [], []>} : vector<4x8xf32>, vector<8x256xf32>, vector<4x256xf32> -> vector<4x256xf32>
    %63 = arith.addf %54, %62 : vector<4x256xf32>
    %c4 = arith.constant 4 : index
    %c0_40 = arith.constant 0 : index
    %c0_41 = arith.constant 0 : index
    %64 = vector.load %arg5[%c4, %c0_40, %c0_41] : memref<9x4x8xf32, #tpu.memory_space<vmem>>, vector<1x4x8xf32>
    %65 = vector.shape_cast %64 : vector<1x4x8xf32> to vector<4x8xf32>
    %cst_42 = arith.constant dense<0.000000e+00> : vector<4x256xf32>
    %66 = tpu.matmul %65, %24, %cst_42 {dimension_numbers = #tpu.dot_dimension_numbers<[1], [0], [0], [1], [0, 0, 1, 1], [], []>} : vector<4x8xf32>, vector<8x256xf32>, vector<4x256xf32> -> vector<4x256xf32>
    %67 = arith.addf %63, %66 : vector<4x256xf32>
    %c255_i32 = arith.constant 255 : i32
    %68 = tpu.dynamic_rotate %24 by %c255_i32 dim 1 : vector<8x256xf32>, i32 -> vector<8x256xf32>
    %c5 = arith.constant 5 : index
    %c0_43 = arith.constant 0 : index
    %c0_44 = arith.constant 0 : index
    %69 = vector.load %arg4[%c5, %c0_43, %c0_44] : memref<9x1x256xf32, #tpu.memory_space<vmem>>, vector<1x1x256xf32>
    %70 = vector.shape_cast %69 : vector<1x1x256xf32> to vector<1x256xf32>
    %71 = vector.broadcast %70 : vector<1x256xf32> to vector<8x256xf32>
    %72 = arith.mulf %68, %71 : vector<8x256xf32>
    %c5_45 = arith.constant 5 : index
    %c0_46 = arith.constant 0 : index
    %c0_47 = arith.constant 0 : index
    %73 = vector.load %arg5[%c5_45, %c0_46, %c0_47] : memref<9x4x8xf32, #tpu.memory_space<vmem>>, vector<1x4x8xf32>
    %74 = vector.shape_cast %73 : vector<1x4x8xf32> to vector<4x8xf32>
    %cst_48 = arith.constant dense<0.000000e+00> : vector<4x256xf32>
    %75 = tpu.matmul %74, %72, %cst_48 {dimension_numbers = #tpu.dot_dimension_numbers<[1], [0], [0], [1], [0, 0, 1, 1], [], []>} : vector<4x8xf32>, vector<8x256xf32>, vector<4x256xf32> -> vector<4x256xf32>
    %76 = arith.addf %67, %75 : vector<4x256xf32>
    %c241_i32 = arith.constant 241 : i32
    %77 = tpu.dynamic_rotate %24 by %c241_i32 dim 1 : vector<8x256xf32>, i32 -> vector<8x256xf32>
    %c6 = arith.constant 6 : index
    %c0_49 = arith.constant 0 : index
    %c0_50 = arith.constant 0 : index
    %78 = vector.load %arg4[%c6, %c0_49, %c0_50] : memref<9x1x256xf32, #tpu.memory_space<vmem>>, vector<1x1x256xf32>
    %79 = vector.shape_cast %78 : vector<1x1x256xf32> to vector<1x256xf32>
    %80 = vector.broadcast %79 : vector<1x256xf32> to vector<8x256xf32>
    %81 = arith.mulf %77, %80 : vector<8x256xf32>
    %c6_51 = arith.constant 6 : index
    %c0_52 = arith.constant 0 : index
    %c0_53 = arith.constant 0 : index
    %82 = vector.load %arg5[%c6_51, %c0_52, %c0_53] : memref<9x4x8xf32, #tpu.memory_space<vmem>>, vector<1x4x8xf32>
    %83 = vector.shape_cast %82 : vector<1x4x8xf32> to vector<4x8xf32>
    %cst_54 = arith.constant dense<0.000000e+00> : vector<4x256xf32>
    %84 = tpu.matmul %83, %81, %cst_54 {dimension_numbers = #tpu.dot_dimension_numbers<[1], [0], [0], [1], [0, 0, 1, 1], [], []>} : vector<4x8xf32>, vector<8x256xf32>, vector<4x256xf32> -> vector<4x256xf32>
    %85 = arith.addf %76, %84 : vector<4x256xf32>
    %c240_i32 = arith.constant 240 : i32
    %86 = tpu.dynamic_rotate %24 by %c240_i32 dim 1 : vector<8x256xf32>, i32 -> vector<8x256xf32>
    %c7 = arith.constant 7 : index
    %c0_55 = arith.constant 0 : index
    %c0_56 = arith.constant 0 : index
    %87 = vector.load %arg4[%c7, %c0_55, %c0_56] : memref<9x1x256xf32, #tpu.memory_space<vmem>>, vector<1x1x256xf32>
    %88 = vector.shape_cast %87 : vector<1x1x256xf32> to vector<1x256xf32>
    %89 = vector.broadcast %88 : vector<1x256xf32> to vector<8x256xf32>
    %90 = arith.mulf %86, %89 : vector<8x256xf32>
    %c7_57 = arith.constant 7 : index
    %c0_58 = arith.constant 0 : index
    %c0_59 = arith.constant 0 : index
    %91 = vector.load %arg5[%c7_57, %c0_58, %c0_59] : memref<9x4x8xf32, #tpu.memory_space<vmem>>, vector<1x4x8xf32>
    %92 = vector.shape_cast %91 : vector<1x4x8xf32> to vector<4x8xf32>
    %cst_60 = arith.constant dense<0.000000e+00> : vector<4x256xf32>
    %93 = tpu.matmul %92, %90, %cst_60 {dimension_numbers = #tpu.dot_dimension_numbers<[1], [0], [0], [1], [0, 0, 1, 1], [], []>} : vector<4x8xf32>, vector<8x256xf32>, vector<4x256xf32> -> vector<4x256xf32>
    %94 = arith.addf %85, %93 : vector<4x256xf32>
    %c239_i32 = arith.constant 239 : i32
    %95 = tpu.dynamic_rotate %24 by %c239_i32 dim 1 : vector<8x256xf32>, i32 -> vector<8x256xf32>
    %c8 = arith.constant 8 : index
    %c0_61 = arith.constant 0 : index
    %c0_62 = arith.constant 0 : index
    %96 = vector.load %arg4[%c8, %c0_61, %c0_62] : memref<9x1x256xf32, #tpu.memory_space<vmem>>, vector<1x1x256xf32>
    %97 = vector.shape_cast %96 : vector<1x1x256xf32> to vector<1x256xf32>
    %98 = vector.broadcast %97 : vector<1x256xf32> to vector<8x256xf32>
    %99 = arith.mulf %95, %98 : vector<8x256xf32>
    %c8_63 = arith.constant 8 : index
    %c0_64 = arith.constant 0 : index
    %c0_65 = arith.constant 0 : index
    %100 = vector.load %arg5[%c8_63, %c0_64, %c0_65] : memref<9x4x8xf32, #tpu.memory_space<vmem>>, vector<1x4x8xf32>
    %101 = vector.shape_cast %100 : vector<1x4x8xf32> to vector<4x8xf32>
    %cst_66 = arith.constant dense<0.000000e+00> : vector<4x256xf32>
    %102 = tpu.matmul %101, %99, %cst_66 {dimension_numbers = #tpu.dot_dimension_numbers<[1], [0], [0], [1], [0, 0, 1, 1], [], []>} : vector<4x8xf32>, vector<8x256xf32>, vector<4x256xf32> -> vector<4x256xf32>
    %103 = arith.addf %94, %102 : vector<4x256xf32>
    %c0_67 = arith.constant 0 : index
    %c0_68 = arith.constant 0 : index
    %c0_69 = arith.constant 0 : index
    %104 = vector.load %arg7[%c0_67, %c0_68, %c0_69] : memref<1x4x256xf32, #tpu.memory_space<vmem>>, vector<1x4x256xf32>
    %105 = vector.shape_cast %104 : vector<1x4x256xf32> to vector<4x256xf32>
    %106 = vector.shape_cast %103 : vector<4x256xf32> to vector<1x4x256xf32>
    tpu.vector_store %arg7[%c0_67, %c0_68, %c0_69], %106 {strides = array<i32>} : memref<1x4x256xf32, #tpu.memory_space<vmem>>, vector<1x4x256xf32>,
    return
  }
  func.func @transform_0(%arg0: i32) -> (i32, i32, i32) {
    %c0_i32 = arith.constant 0 : i32
    %c0_i32_0 = arith.constant 0 : i32
    %c0_i32_1 = arith.constant 0 : i32
    return %arg0, %c0_i32, %c0_i32_0 : i32, i32, i32
  }
  func.func @transform_1(%arg0: i32) -> (i32, i32, i32) {
    %c0_i32 = arith.constant 0 : i32
    %c0_i32_0 = arith.constant 0 : i32
    %c0_i32_1 = arith.constant 0 : i32
    return %arg0, %c0_i32, %c0_i32_0 : i32, i32, i32
  }
  func.func @transform_2(%arg0: i32) -> (i32, i32) {
    %c0_i32 = arith.constant 0 : i32
    %c0_i32_0 = arith.constant 0 : i32
    %c0_i32_1 = arith.constant 0 : i32
    return %c0_i32, %c0_i32_0 : i32, i32
  }
  func.func @transform_3(%arg0: i32) -> (i32, i32, i32) {
    %c0_i32 = arith.constant 0 : i32
    %c0_i32_0 = arith.constant 0 : i32
    %c0_i32_1 = arith.constant 0 : i32
    %c0_i32_2 = arith.constant 0 : i32
    return %c0_i32, %c0_i32_0, %c0_i32_1 : i32, i32, i32
  }
  func.func @transform_4(%arg0: i32) -> (i32, i32, i32) {
    %c0_i32 = arith.constant 0 : i32
    %c0_i32_0 = arith.constant 0 : i32
    %c0_i32_1 = arith.constant 0 : i32
    %c0_i32_2 = arith.constant 0 : i32
    return %c0_i32, %c0_i32_0, %c0_i32_1 : i32, i32, i32
  }
  func.func @transform_5(%arg0: i32) -> (i32, i32) {
    %c0_i32 = arith.constant 0 : i32
    %c0_i32_0 = arith.constant 0 : i32
    %c0_i32_1 = arith.constant 0 : i32
    return %c0_i32, %c0_i32_0 : i32, i32
  }
  func.func @transform_6(%arg0: i32) -> (i32, i32, i32) {
    %c0_i32 = arith.constant 0 : i32
    %c0_i32_0 = arith.constant 0 : i32
    %c0_i32_1 = arith.constant 0 : i32
    return %arg0, %c0_i32, %c0_i32_0 : i32, i32, i32
  }
}

</mosaic_0001>

<llo_original>
// kernel: tpu_custom_call.1
$region0: #{tpu_custom_call.1}
  #allocation0 [shape = 'u32[]', space=smem, size = 0x4, offset = 0x4, fixed_abs, tag = 'smem constant byte address 0x4 - core index']
  #allocation1 [shape = 'u32[144,128]{1,0:T(1,128)}', space=vmem, size = 0x12000, scoped, tag = 'internal scratch']
  %s0 = inlined_call_operand.vmem [shape: f32[2,4,256], index: 0, kind: input, shape index: {}]
  %s1 = inlined_call_operand.vmem [shape: f32[2,4,64], index: 1, kind: input, shape index: {}]
  %s2 = inlined_call_operand.hbm [shape: f32[64,256], index: 2, kind: input, shape index: {}]
  %s3 = inlined_call_operand.vmem [shape: f32[9,1,256], index: 3, kind: input, shape index: {}]
  %s4 = inlined_call_operand.vmem [shape: f32[9,4,8], index: 4, kind: input, shape index: {}]
  %s5 = inlined_call_operand.vmem [shape: f32[4,1], index: 5, kind: input, shape index: {}]
  %s6 = inlined_call_operand.hbm [shape: f32[2,4,256], index: 6, kind: output, shape index: {}]
  %s7 = sld [smem:[#allocation0]]
  $region61: #{tpu_custom_call.1} parent=0
    _
  %s9 = ssub.s32 1, %s7
  %s10 = scalar_select 0, %s9, %s7
  $region1: #{tpu_custom_call.1} parent=0
    #allocation2 [shape = 'u8[65536]{0}', space=vmem, size = 0x10000, scoped, tag = 'input window, operand 2, single buffered']
    #allocation3 [shape = 's32[2]{0}', space=sflag, size = 0x8, scoped, tag = 'scoped memory for tpu_custom_call.1']
    #allocation4 [shape = 's32[2]{0}', space=sflag, size = 0x8, scoped, tag = 'scoped memory for tpu_custom_call.1']
    #allocation5 [shape = 'u8[8192]{0}', space=vmem, size = 0x2000, scoped, tag = 'output window, operand 0']
    %11 = vsyncpa [#allocation3], 0
    %12 = vsyncpa [#allocation4], 0
    %s13 = scalar_lea.sflag [#allocation4], 1
    %14 = vsyncpa %s13, 0
    loop: start=0, step=1, limit=4
    $region2: #{tpu_custom_call.1} parent=1 // loop_pre_header
      _
    $region3: #{tpu_custom_call.1} parent=1 // loop_header
      %s16 = sphi 0, %s20
      %p17 = scmp.ge.s32.totalorder %s16, 4
      %s26 = sphi 0, %s28
      %s29 = sphi 0, %s26
      %s30 = sphi 0, %s29
      %s46 = sphi 0, %s30
      %s52 = sphi 0, %s54
      %s55 = sphi 0, %s52
      %s56 = sphi 0, %s55
      %s72 = sphi 0, %s56
      %s76 = sphi 0, %s76
      %s78 = sphi 0, %s76
      %s79 = sphi 0, %s78
      %s93 = sphi 0, %s79
      %s97 = sphi 0, %s97
      %s99 = sphi 0, %s97
      %s100 = sphi 0, %s99
      %s114 = sphi 0, %s100
      %s118 = sphi 0, %s118
      %s120 = sphi 0, %s118
      %s121 = sphi 0, %s120
      %s135 = sphi 0, %s121
      %s139 = sphi 0, %s139
      %s141 = sphi 0, %s139
      %s142 = sphi 0, %s141
      %s156 = sphi 0, %s142
      %s162 = sphi 0, %s164
      %s165 = sphi 0, %s162
      %s166 = sphi 0, %s165
      %s182 = sphi 0, %s166
    $region4: #{tpu_custom_call.1} parent=1 // loop_header_branch
      %19 = sbr.rel (%p17) target = $region8
    $region5: #{tpu_custom_call.1} parent=1 // loop_body
      %s21 = ssub.s32 %s16, 1
      %s22 = ssub.s32 %s16, 2
      %s23 = sadd.s32 %s16, 1
      %s24 = ssub.s32 %s16, %s23
      %p25 = scmp.eq.s32.totalorder %s24, 0
      %s27 = sadd.s32 %s26, 1
      %s28 = scalar_select %p25, %s26, %s27
      %p31 = pneg %p25
      %p32 = scmp.eq.s32.totalorder %s16, 1
      %p33 = por %p31, %p32
      %p34 = scmp.ne.s32.totalorder %s26, %s29
      %p35 = scmp.eq.s32.totalorder %s16, 0
      %p36 = por %p34, %p35
      %p37 = scmp.ne.s32.totalorder %s26, %s29
      %p38 = scmp.eq.s32.totalorder %s21, 1
      %p39 = por %p37, %p38
      %p40 = scmp.ne.s32.totalorder %s29, %s30
      %p41 = scmp.eq.s32.totalorder %s21, 0
      %p42 = por %p40, %p41
      %p43 = scmp.ne.s32.totalorder %s29, %s30
      %p44 = scmp.eq.s32.totalorder %s22, 1
      %p45 = por %p43, %p44
      %p47 = scmp.ne.s32.totalorder %s30, %s46
      %p48 = scmp.eq.s32.totalorder %s22, 0
      %p49 = por %p47, %p48
      %s50 = ssub.s32 %s16, %s23
      %p51 = scmp.eq.s32.totalorder %s50, 0
      %s53 = sadd.s32 %s52, 1
      %s54 = scalar_select %p51, %s52, %s53
      %p57 = pneg %p51
      %p58 = scmp.eq.s32.totalorder %s16, 1
      %p59 = por %p57, %p58
      %p60 = scmp.ne.s32.totalorder %s52, %s55
      %p61 = scmp.eq.s32.totalorder %s16, 0
      %p62 = por %p60, %p61
      %p63 = scmp.ne.s32.totalorder %s52, %s55
      %p64 = scmp.eq.s32.totalorder %s21, 1
      %p65 = por %p63, %p64
      %p66 = scmp.ne.s32.totalorder %s55, %s56
      %p67 = scmp.eq.s32.totalorder %s21, 0
      %p68 = por %p66, %p67
      %p69 = scmp.ne.s32.totalorder %s55, %s56
      %p70 = scmp.eq.s32.totalorder %s22, 1
      %p71 = por %p69, %p70
      %p73 = scmp.ne.s32.totalorder %s56, %s72
      %p74 = scmp.eq.s32.totalorder %s22, 0
      %p75 = por %p73, %p74
      %s77 = sadd.s32 %s76, 1
      %p80 = scmp.eq.s32.totalorder %s16, 1
      %p81 = scmp.ne.s32.totalorder %s76, %s78
      %p82 = scmp.eq.s32.totalorder %s16, 0
      %p83 = por %p81, %p82
      %p84 = scmp.ne.s32.totalorder %s76, %s78
      %p85 = scmp.eq.s32.totalorder %s21, 1
      %p86 = por %p84, %p85
      %p87 = scmp.ne.s32.totalorder %s78, %s79
      %p88 = scmp.eq.s32.totalorder %s21, 0
      %p89 = por %p87, %p88
      %p90 = scmp.ne.s32.totalorder %s78, %s79
      %p91 = scmp.eq.s32.totalorder %s22, 1
      %p92 = por %p90, %p91
      %p94 = scmp.ne.s32.totalorder %s79, %s93
      %p95 = scmp.eq.s32.totalorder %s22, 0
      %p96 = por %p94, %p95
      %s98 = sadd.s32 %s97, 1
      %p101 = scmp.eq.s32.totalorder %s16, 1
      %p102 = scmp.ne.s32.totalorder %s97, %s99
      %p103 = scmp.eq.s32.totalorder %s16, 0
      %p104 = por %p102, %p103
      %p105 = scmp.ne.s32.totalorder %s97, %s99
      %p106 = scmp.eq.s32.totalorder %s21, 1
      %p107 = por %p105, %p106
      %p108 = scmp.ne.s32.totalorder %s99, %s100
      %p109 = scmp.eq.s32.totalorder %s21, 0
      %p110 = por %p108, %p109
      %p111 = scmp.ne.s32.totalorder %s99, %s100
      %p112 = scmp.eq.s32.totalorder %s22, 1
      %p113 = por %p111, %p112
      %p115 = scmp.ne.s32.totalorder %s100, %s114
      %p116 = scmp.eq.s32.totalorder %s22, 0
      %p117 = por %p115, %p116
      %s119 = sadd.s32 %s118, 1
      %p122 = scmp.eq.s32.totalorder %s16, 1
      %p123 = scmp.ne.s32.totalorder %s118, %s120
      %p124 = scmp.eq.s32.totalorder %s16, 0
      %p125 = por %p123, %p124
      %p126 = scmp.ne.s32.totalorder %s118, %s120
      %p127 = scmp.eq.s32.totalorder %s21, 1
      %p128 = por %p126, %p127
      %p129 = scmp.ne.s32.totalorder %s120, %s121
      %p130 = scmp.eq.s32.totalorder %s21, 0
      %p131 = por %p129, %p130
      %p132 = scmp.ne.s32.totalorder %s120, %s121
      %p133 = scmp.eq.s32.totalorder %s22, 1
      %p134 = por %p132, %p133
      %p136 = scmp.ne.s32.totalorder %s121, %s135
      %p137 = scmp.eq.s32.totalorder %s22, 0
      %p138 = por %p136, %p137
      %s140 = sadd.s32 %s139, 1
      %p143 = scmp.eq.s32.totalorder %s16, 1
      %p144 = scmp.ne.s32.totalorder %s139, %s141
      %p145 = scmp.eq.s32.totalorder %s16, 0
      %p146 = por %p144, %p145
      %p147 = scmp.ne.s32.totalorder %s139, %s141
      %p148 = scmp.eq.s32.totalorder %s21, 1
      %p149 = por %p147, %p148
      %p150 = scmp.ne.s32.totalorder %s141, %s142
      %p151 = scmp.eq.s32.totalorder %s21, 0
      %p152 = por %p150, %p151
      %p153 = scmp.ne.s32.totalorder %s141, %s142
      %p154 = scmp.eq.s32.totalorder %s22, 1
      %p155 = por %p153, %p154
      %p157 = scmp.ne.s32.totalorder %s142, %s156
      %p158 = scmp.eq.s32.totalorder %s22, 0
      %p159 = por %p157, %p158
      %s160 = ssub.s32 %s16, %s23
      %p161 = scmp.eq.s32.totalorder %s160, 0
      %s163 = sadd.s32 %s162, 1
      %s164 = scalar_select %p161, %s162, %s163
      %p167 = pneg %p161
      %p168 = scmp.eq.s32.totalorder %s16, 1
      %p169 = por %p167, %p168
      %p170 = scmp.ne.s32.totalorder %s162, %s165
      %p171 = scmp.eq.s32.totalorder %s16, 0
      %p172 = por %p170, %p171
      %p173 = scmp.ne.s32.totalorder %s162, %s165
      %p174 = scmp.eq.s32.totalorder %s21, 1
      %p175 = por %p173, %p174
      %p176 = scmp.ne.s32.totalorder %s165, %s166
      %p177 = scmp.eq.s32.totalorder %s21, 0
      %p178 = por %p176, %p177
      %p179 = scmp.ne.s32.totalorder %s165, %s166
      %p180 = scmp.eq.s32.totalorder %s22, 1
      %p181 = por %p179, %p180
      %p183 = scmp.ne.s32.totalorder %s166, %s182
      %p184 = scmp.eq.s32.totalorder %s22, 0
      %p185 = por %p183, %p184
      %p186 = scmp.le.s32.totalorder 1, %s16
      %p187 = scmp.lt.s32.totalorder %s16, 3
      %p188 = pnand %p186, %p187
      %p189 = pneg %p188
      // Predicated region
      $region9: #{tpu_custom_call.1} parent=5 // pred_check
        _
      $region10: #{tpu_custom_call.1} parent=5 // pred_check_branch
        %191 = sbr.rel (%p188) target = $region12
      $region11: #{tpu_custom_call.1} parent=5 // pred_region
        %s192 = ssub.s32 %s16, 1
        // Predicated region
        $region13: #{tpu_custom_call.1} parent=11 // pred_check
          %p193 = pneg %p89
        $region14: #{tpu_custom_call.1} parent=11 // pred_check_branch
          %195 = sbr.rel (%p193) target = $region16
        $region15: #{tpu_custom_call.1} parent=11 // pred_region
          %s197 = ssub.s32 2048, 2048
          %198 = vsyncadd [#allocation3], %s197
          %s199 = sshll.u32 [#allocation2], 4
          %s200 = int_to_ptr.vmem [resolvable:$true] %s199
          %205 = dma.hbm_to_vmem [thread:$0]  %s2, 2048, %s200, [#allocation3], 256, 256, 16
        $region16: #{tpu_custom_call.1} parent=11 // pred_fallthru
          _
        // Predicated region
        $region17: #{tpu_custom_call.1} parent=11 // pred_check
          %p206 = pneg %p110
        $region18: #{tpu_custom_call.1} parent=11 // pred_check_branch
          %208 = sbr.rel (%p206) target = $region20
        $region19: #{tpu_custom_call.1} parent=11 // pred_region
          _
        $region20: #{tpu_custom_call.1} parent=11 // pred_fallthru
          _
        // Predicated region
        $region21: #{tpu_custom_call.1} parent=11 // pred_check
          %p209 = pneg %p131
        $region22: #{tpu_custom_call.1} parent=11 // pred_check_branch
          %211 = sbr.rel (%p209) target = $region24
        $region23: #{tpu_custom_call.1} parent=11 // pred_region
          _
        $region24: #{tpu_custom_call.1} parent=11 // pred_fallthru
          _
        // Predicated region
        $region25: #{tpu_custom_call.1} parent=11 // pred_check
          %p212 = pneg %p152
        $region26: #{tpu_custom_call.1} parent=11 // pred_check_branch
          %214 = sbr.rel (%p212) target = $region28
        $region27: #{tpu_custom_call.1} parent=11 // pred_region
          _
        $region28: #{tpu_custom_call.1} parent=11 // pred_fallthru
          _
      $region12: #{tpu_custom_call.1} parent=5 // pred_fallthru
        _
      %p215 = scmp.lt.s32.totalorder %s16, 2
      // Predicated region
      $region29: #{tpu_custom_call.1} parent=5 // pred_check
        %p216 = pneg %p215
      $region30: #{tpu_custom_call.1} parent=5 // pred_check_branch
        %218 = sbr.rel (%p216) target = $region32
      $region31: #{tpu_custom_call.1} parent=5 // pred_region
        // Predicated region
        $region33: #{tpu_custom_call.1} parent=31 // pred_check
          %p219 = pneg %p36
        $region34: #{tpu_custom_call.1} parent=31 // pred_check_branch
          %221 = sbr.rel (%p219) target = $region36
        $region35: #{tpu_custom_call.1} parent=31 // pred_region
          %p222 = scmp.lt.s32.totalorder %s16, 1
          %s223 = scalar_select %p222, %s16, 1
          %s224 = smul.addr %s223, 2
          %s225 = smul.addr %s224, 4
          %s226 = scalar_lea.vmem %s0, %s225
        $region36: #{tpu_custom_call.1} parent=31 // pred_fallthru
          _
        // Predicated region
        $region37: #{tpu_custom_call.1} parent=31 // pred_check
          %p227 = pneg %p62
        $region38: #{tpu_custom_call.1} parent=31 // pred_check_branch
          %229 = sbr.rel (%p227) target = $region40
        $region39: #{tpu_custom_call.1} parent=31 // pred_region
          %p230 = scmp.lt.s32.totalorder %s16, 1
          %s231 = scalar_select %p230, %s16, 1
          %s232 = smul.addr %s231, 4
          %s233 = scalar_lea.vmem %s1, %s232
        $region40: #{tpu_custom_call.1} parent=31 // pred_fallthru
          _
      $region32: #{tpu_custom_call.1} parent=5 // pred_fallthru
        _
      %p234 = scmp.le.s32.totalorder 1, %s16
      %p235 = scmp.lt.s32.totalorder %s16, 3
      %p236 = pnand %p234, %p235
      %p237 = pneg %p236
      // Predicated region
      $region41: #{tpu_custom_call.1} parent=5 // pred_check
        _
      $region42: #{tpu_custom_call.1} parent=5 // pred_check_branch
        %239 = sbr.rel (%p236) target = $region44
      $region43: #{tpu_custom_call.1} parent=5 // pred_region
        %s240 = ssub.s32 %s16, 1
        // Predicated region
        $region45: #{tpu_custom_call.1} parent=43 // pred_check
          %p241 = pneg %p89
        $region46: #{tpu_custom_call.1} parent=43 // pred_check_branch
          %243 = sbr.rel (%p241) target = $region48
        $region47: #{tpu_custom_call.1} parent=43 // pred_region
          %244 = dma.done [#allocation3], 2048
        $region48: #{tpu_custom_call.1} parent=43 // pred_fallthru
          _
        %p245 = scmp.lt.s32.totalorder %s21, 1
        %s246 = scalar_select %p245, %s21, 1
        %s247 = smul.addr %s246, 2
        %s248 = smul.addr %s247, 4
        %s249 = scalar_lea.vmem %s0, %s248
        %p250 = pneg %p42
        %p251 = pneg %p39
        %p252 = scmp.lt.s32.totalorder %s21, 1
        %s253 = scalar_select %p252, %s21, 1
        %s254 = smul.addr %s253, 4
        %s255 = scalar_lea.vmem %s1, %s254
        %p256 = pneg %p68
        %p257 = pneg %p65
        %p258 = pneg %p89
        %p259 = pneg %p86
        %p260 = pneg %p110
        %p261 = pneg %p107
        %p262 = pneg %p131
        %p263 = pneg %p128
        %p264 = pneg %p152
        %p265 = pneg %p149
        %p266 = pneg %p178
        %p267 = pneg %p175
        %s268 = sand.u32 %s165, 1
        %s269 = scalar_lea.sflag [#allocation4], %s268
        %s270 = sand.u32 %s165, 1
        %s271 = smul.addr %s270, 8
        %s272 = scalar_lea.vmem [#allocation5], %s271
        %p273 = scmp.lt.s32.totalorder %s21, 1
        %s274 = scalar_select %p273, %s21, 1
        %s275 = smul.addr %s274, 2
        %s276 = smul.addr %s275, 4
        %s277 = scalar_lea.vmem %s0, %s276
        %p278 = scmp.lt.s32.totalorder %s21, 1
        %s279 = scalar_select %p278, %s21, 1
        %s280 = smul.addr %s279, 4
        %s281 = scalar_lea.vmem %s1, %s280
        %v282 = vld [vmem:[%s277] sm:$0xff]
        %v284 = vcombine.high %v282, %v282
        %vm286 = vcmask 1043456
        %v287 = vsel %vm286, %v282, 0.0
        %v288 = vsel %vm286, %v284, 0.0
        %v289 = vadd.f32 %v287, %v288
        %290 = vadd.xlane.f32.xlu0 %v289
        %v291 = vpop.xlane.xlu0 %290
        %v292 = vmul.f32 %v291, 0.00390625
        %v295 = vunpack.c.l.s4 839922192
        %v296 = vunpack.c.0.s8 %v295
        %v297 = vlaneseq
        %v298 = vshrl.u32 %v297, 7
        %v299 = vsub.s32 %v296, %v298
        %v300 = vrot.slane %v292, %v299
        %v302 = vsub.f32 %v282, %v300
        %v303 = vmul.f32 %v302, %v302
        %v305 = vcombine.high %v303, %v303
        %v307 = vsel %vm286, %v303, 0.0
        %v308 = vsel %vm286, %v305, 0.0
        %v309 = vadd.f32 %v307, %v308
        %310 = vadd.xlane.f32.xlu0 %v309
        %v311 = vpop.xlane.xlu0 %310
        %v312 = vmul.f32 %v311, 0.00390625
        %v313 = vadd.f32 %v312, 1e-05
        %v314 = vrsqrt.pop %v313
        %v317 = vunpack.c.l.s4 839922192
        %v318 = vunpack.c.0.s8 %v317
        %v319 = vlaneseq
        %v320 = vshrl.u32 %v319, 7
        %v321 = vsub.s32 %v318, %v320
        %v322 = vrot.slane %v314, %v321
        %v324 = vmul.f32 %v302, %v322
        %v325 = vmax.f32 %v324, 0.0
        %v326 = vld [vmem:[%s281] sm:$0xf]
        %v327 = vld [vmem:[#allocation2] sm:$0xff]
        %v328 = vld [vmem:[#allocation2 + $0x8] sm:$0xff]
        %v329 = vld [vmem:[#allocation2 + $0x10] sm:$0xff]
        %v330 = vld [vmem:[#allocation2 + $0x18] sm:$0xff]
        %v331 = vld [vmem:[#allocation2 + $0x20] sm:$0xff]
        %v332 = vld [vmem:[#allocation2 + $0x28] sm:$0xff]
        %v333 = vld [vmem:[#allocation2 + $0x30] sm:$0xff]
        %v334 = vld [vmem:[#allocation2 + $0x38] sm:$0xff]
        %v335 = vld [vmem:[#allocation2 + $0x40] sm:$0xff]
        %v336 = vld [vmem:[#allocation2 + $0x48] sm:$0xff]
        %v337 = vld [vmem:[#allocation2 + $0x50] sm:$0xff]
        %v338 = vld [vmem:[#allocation2 + $0x58] sm:$0xff]
        %v339 = vld [vmem:[#allocation2 + $0x60] sm:$0xff]
        %v340 = vld [vmem:[#allocation2 + $0x68] sm:$0xff]
        %v341 = vld [vmem:[#allocation2 + $0x70] sm:$0xff]
        %v342 = vld [vmem:[#allocation2 + $0x78] sm:$0xff]
        %vm343 = vcmask 523264
        %v345 = vsel %vm343, %v326, 0
        %347 = vmatprep.subr.mxu0 0.0
        %348 = vmatpush1.msra.mxu0 0.0
        %349 = vmatprep.subr.mxu0 0.0
        %350 = vmatpush1.msra.mxu0 0.0
        %351 = vmatprep.subr.mxu0 0.0
        %352 = vmatpush1.msra.mxu0 0.0
        %353 = vmatprep.subr.mxu0 0.0
        %354 = vmatpush1.msra.mxu0 0.0
        %355 = vmatprep.subr.mxu0 0.0
        %356 = vmatpush1.msra.mxu0 0.0
        %357 = vmatprep.subr.mxu0 0.0
        %358 = vmatpush1.msra.mxu0 0.0
        %359 = vmatprep.subr.mxu0 0.0
        %360 = vmatpush1.msra.mxu0 0.0
        %361 = vmatprep.subr.mxu0 0.0
        %362 = vmatpush1.msra.mxu0 0.0
        %363 = vmatprep.subr.mxu0 %v342
        %364 = vmatpush1.msra.mxu0 %v341
        %365 = vmatprep.subr.mxu0 %v340
        %366 = vmatpush1.msra.mxu0 %v339
        %367 = vmatprep.subr.mxu0 %v338
        %368 = vmatpush1.msra.mxu0 %v337
        %369 = vmatprep.subr.mxu0 %v336
        %370 = vmatpush1.msra.mxu0 %v335
        %371 = vmatprep.subr.mxu0 %v334
        %372 = vmatpush1.msra.mxu0 %v333
        %373 = vmatprep.subr.mxu0 %v332
        %374 = vmatpush1.msra.mxu0 %v331
        %375 = vmatprep.subr.mxu0 %v330
        %376 = vmatpush1.msra.mxu0 %v329
        %377 = vmatprep.subr.mxu0 %v328
        %378 = vmatpush1.msra.mxu0 %v327
        %379 = vmatprep.subr.mxu0 0.0
        %380 = vmatpush2.msra.mxu0 0.0
        %381 = vmatprep.subr.mxu0 0.0
        %382 = vmatpush2.msra.mxu0 0.0
        %383 = vmatprep.subr.mxu0 0.0
        %384 = vmatpush2.msra.mxu0 0.0
        %385 = vmatprep.subr.mxu0 0.0
        %386 = vmatpush2.msra.mxu0 0.0
        %387 = vmatprep.subr.mxu0 0.0
        %388 = vmatpush2.msra.mxu0 0.0
        %389 = vmatprep.subr.mxu0 0.0
        %390 = vmatpush2.msra.mxu0 0.0
        %391 = vmatprep.subr.mxu0 0.0
        %392 = vmatpush2.msra.mxu0 0.0
        %393 = vmatprep.subr.mxu0 0.0
        %394 = vmatpush2.msra.mxu0 0.0
        %395 = vmatprep.subr.mxu0 0.0
        %396 = vmatpush2.msra.mxu0 0.0
        %397 = vmatprep.subr.mxu0 0.0
        %398 = vmatpush2.msra.mxu0 0.0
        %399 = vmatprep.subr.mxu0 0.0
        %400 = vmatpush2.msra.mxu0 0.0
        %401 = vmatprep.subr.mxu0 0.0
        %402 = vmatpush2.msra.mxu0 0.0
        %403 = vmatprep.subr.mxu0 0.0
        %404 = vmatpush2.msra.mxu0 0.0
        %405 = vmatprep.subr.mxu0 0.0
        %406 = vmatpush2.msra.mxu0 0.0
        %407 = vmatprep.subr.mxu0 0.0
        %408 = vmatpush2.msra.mxu0 0.0
        %409 = vmatprep.subr.mxu0 0.0
        %410 = vmatpush2.msra.mxu0 0.0
        %411 = vmatprep.mubr.f32.mxu0 0.0
        %412 = vmatmul.mubr.f32.gmra.mxu0 %v345
        %v413 = vpop.f32.mrf.mxu0
        %v414 = vadd.f32 0.0, %v413
        %v415 = vpop.f32.mrf.mxu0
        %v416 = vadd.f32 0.0, %v415
        %417 = vdwg.mxu0
        %v419 = vcombine.high %v325, %v325
        %v423 = vrot.slane %v414, 4
        %v424 = vrot.slane %v416, 4
        %v427 = vsel %vm286, %v325, %v423
        %v428 = vsel %vm286, %v419, %v424
        %v429 = vld [vmem:[%s5] sm:$0xf]
        %431 = vset.pattern.permute.xlu0 0
        %432 = vperm.xlu0 %431, %v429
        %v433 = vpop.permute.xlu0 %432
        %435 = vrot.lane.b32.xlu0 %v427, 17
        %v436 = vpop.permute.xlu0 %435
        %437 = vrot.lane.b32.xlu0 %v428, 17
        %v438 = vpop.permute.xlu0 %437
        %v439 = vlaneseq
        %v440 = vand.u32 %v439, 127
        %vm441 = vcmp.lt.s32.totalorder %v440, 17
        %v442 = vsel %vm441, %v436, %v438
        %v443 = vsel %vm441, %v438, %v436
        %v444 = vld [vmem:[%s3] sm:$0x3]
        %v446 = vlaneseq
        %v447 = vshrl.u32 %v446, 7
        %v448 = vsub.s32 0, %v447
        %v449 = vrot.slane %v444, %v448
        %v450 = vlaneseq
        %v451 = vshrl.u32 %v450, 7
        %v452 = vsub.s32 1, %v451
        %v453 = vrot.slane %v444, %v452
        %v456 = vmul.f32 %v443, %v449
        %v457 = vmul.f32 %v442, %v453
        %v458 = vld [vmem:[%s4] sm:$0xf]
        %vm459 = vcmask 64512
        %v461 = vsel %vm459, %v458, 0
        %463 = vmatprep.subr.mxu0 0.0
        %464 = vmatpush1.msra.mxu0 0.0
        %465 = vmatprep.subr.mxu0 0.0
        %466 = vmatpush1.msra.mxu0 0.0
        %467 = vmatprep.subr.mxu0 0.0
        %468 = vmatpush1.msra.mxu0 0.0
        %469 = vmatprep.subr.mxu0 0.0
        %470 = vmatpush1.msra.mxu0 0.0
        %471 = vmatprep.subr.mxu0 0.0
        %472 = vmatpush1.msra.mxu0 0.0
        %473 = vmatprep.subr.mxu0 0.0
        %474 = vmatpush1.msra.mxu0 0.0
        %475 = vmatprep.subr.mxu0 0.0
        %476 = vmatpush1.msra.mxu0 0.0
        %477 = vmatprep.subr.mxu0 0.0
        %478 = vmatpush1.msra.mxu0 0.0
        %479 = vmatprep.subr.mxu0 0.0
        %480 = vmatpush1.msra.mxu0 0.0
        %481 = vmatprep.subr.mxu0 0.0
        %482 = vmatpush1.msra.mxu0 0.0
        %483 = vmatprep.subr.mxu0 0.0
        %484 = vmatpush1.msra.mxu0 0.0
        %485 = vmatprep.subr.mxu0 0.0
        %486 = vmatpush1.msra.mxu0 0.0
        %487 = vmatprep.subr.mxu0 0.0
        %488 = vmatpush1.msra.mxu0 0.0
        %489 = vmatprep.subr.mxu0 0.0
        %490 = vmatpush1.msra.mxu0 0.0
        %491 = vmatprep.subr.mxu0 0.0
        %492 = vmatpush1.msra.mxu0 0.0
        %493 = vmatprep.subr.mxu0 %v457
        %494 = vmatpush1.msra.mxu0 %v456
        %495 = vmatprep.subr.mxu0 0.0
        %496 = vmatpush2.msra.mxu0 0.0
        %497 = vmatprep.subr.mxu0 0.0
        %498 = vmatpush2.msra.mxu0 0.0
        %499 = vmatprep.subr.mxu0 0.0
        %500 = vmatpush2.msra.mxu0 0.0
        %501 = vmatprep.subr.mxu0 0.0
        %502 = vmatpush2.msra.mxu0 0.0
        %503 = vmatprep.subr.mxu0 0.0
        %504 = vmatpush2.msra.mxu0 0.0
        %505 = vmatprep.subr.mxu0 0.0
        %506 = vmatpush2.msra.mxu0 0.0
        %507 = vmatprep.subr.mxu0 0.0
        %508 = vmatpush2.msra.mxu0 0.0
        %509 = vmatprep.subr.mxu0 0.0
        %510 = vmatpush2.msra.mxu0 0.0
        %511 = vmatprep.subr.mxu0 0.0
        %512 = vmatpush2.msra.mxu0 0.0
        %513 = vmatprep.subr.mxu0 0.0
        %514 = vmatpush2.msra.mxu0 0.0
        %515 = vmatprep.subr.mxu0 0.0
        %516 = vmatpush2.msra.mxu0 0.0
        %517 = vmatprep.subr.mxu0 0.0
        %518 = vmatpush2.msra.mxu0 0.0
        %519 = vmatprep.subr.mxu0 0.0
        %520 = vmatpush2.msra.mxu0 0.0
        %521 = vmatprep.subr.mxu0 0.0
        %522 = vmatpush2.msra.mxu0 0.0
        %523 = vmatprep.subr.mxu0 0.0
        %524 = vmatpush2.msra.mxu0 0.0
        %525 = vmatprep.subr.mxu0 0.0
        %526 = vmatpush2.msra.mxu0 0.0
        %527 = vmatprep.mubr.f32.mxu0 0.0
        %528 = vmatmul.mubr.f32.gmra.mxu0 %v461
        %v529 = vpop.f32.mrf.mxu0
        %v530 = vadd.f32 0.0, %v529
        %v531 = vpop.f32.mrf.mxu0
        %v532 = vadd.f32 0.0, %v531
        %533 = vdwg.mxu0
        %v534 = vadd.f32 %v433, %v530
        %v535 = vadd.f32 %v433, %v532
        %536 = vrot.lane.b32.xlu0 %v427, 16
        %v537 = vpop.permute.xlu0 %536
        %538 = vrot.lane.b32.xlu0 %v428, 16
        %v539 = vpop.permute.xlu0 %538
        %vm540 = vcmp.lt.s32.totalorder %v440, 16
        %v541 = vsel %vm540, %v537, %v539
        %v542 = vsel %vm540, %v539, %v537
        %s543 = scalar_lea.vmem %s3, 2
        %v544 = vld [vmem:[%s543] sm:$0x3]
        %v546 = vlaneseq
        %v547 = vshrl.u32 %v546, 7
        %v548 = vsub.s32 0, %v547
        %v549 = vrot.slane %v544, %v548
        %v550 = vlaneseq
        %v551 = vshrl.u32 %v550, 7
        %v552 = vsub.s32 1, %v551
        %v553 = vrot.slane %v544, %v552
        %v556 = vmul.f32 %v542, %v549
        %v557 = vmul.f32 %v541, %v553
        %s558 = scalar_lea.vmem %s4, 4
        %v559 = vld [vmem:[%s558] sm:$0xf]
        %v561 = vsel %vm459, %v559, 0
        %563 = vmatprep.subr.mxu0 0.0
        %564 = vmatpush1.msra.mxu0 0.0
        %565 = vmatprep.subr.mxu0 0.0
        %566 = vmatpush1.msra.mxu0 0.0
        %567 = vmatprep.subr.mxu0 0.0
        %568 = vmatpush1.msra.mxu0 0.0
        %569 = vmatprep.subr.mxu0 0.0
        %570 = vmatpush1.msra.mxu0 0.0
        %571 = vmatprep.subr.mxu0 0.0
        %572 = vmatpush1.msra.mxu0 0.0
        %573 = vmatprep.subr.mxu0 0.0
        %574 = vmatpush1.msra.mxu0 0.0
        %575 = vmatprep.subr.mxu0 0.0
        %576 = vmatpush1.msra.mxu0 0.0
        %577 = vmatprep.subr.mxu0 0.0
        %578 = vmatpush1.msra.mxu0 0.0
        %579 = vmatprep.subr.mxu0 0.0
        %580 = vmatpush1.msra.mxu0 0.0
        %581 = vmatprep.subr.mxu0 0.0
        %582 = vmatpush1.msra.mxu0 0.0
        %583 = vmatprep.subr.mxu0 0.0
        %584 = vmatpush1.msra.mxu0 0.0
        %585 = vmatprep.subr.mxu0 0.0
        %586 = vmatpush1.msra.mxu0 0.0
        %587 = vmatprep.subr.mxu0 0.0
        %588 = vmatpush1.msra.mxu0 0.0
        %589 = vmatprep.subr.mxu0 0.0
        %590 = vmatpush1.msra.mxu0 0.0
        %591 = vmatprep.subr.mxu0 0.0
        %592 = vmatpush1.msra.mxu0 0.0
        %593 = vmatprep.subr.mxu0 %v557
        %594 = vmatpush1.msra.mxu0 %v556
        %595 = vmatprep.subr.mxu0 0.0
        %596 = vmatpush2.msra.mxu0 0.0
        %597 = vmatprep.subr.mxu0 0.0
        %598 = vmatpush2.msra.mxu0 0.0
        %599 = vmatprep.subr.mxu0 0.0
        %600 = vmatpush2.msra.mxu0 0.0
        %601 = vmatprep.subr.mxu0 0.0
        %602 = vmatpush2.msra.mxu0 0.0
        %603 = vmatprep.subr.mxu0 0.0
        %604 = vmatpush2.msra.mxu0 0.0
        %605 = vmatprep.subr.mxu0 0.0
        %606 = vmatpush2.msra.mxu0 0.0
        %607 = vmatprep.subr.mxu0 0.0
        %608 = vmatpush2.msra.mxu0 0.0
        %609 = vmatprep.subr.mxu0 0.0
        %610 = vmatpush2.msra.mxu0 0.0
        %611 = vmatprep.subr.mxu0 0.0
        %612 = vmatpush2.msra.mxu0 0.0
        %613 = vmatprep.subr.mxu0 0.0
        %614 = vmatpush2.msra.mxu0 0.0
        %615 = vmatprep.subr.mxu0 0.0
        %616 = vmatpush2.msra.mxu0 0.0
        %617 = vmatprep.subr.mxu0 0.0
        %618 = vmatpush2.msra.mxu0 0.0
        %619 = vmatprep.subr.mxu0 0.0
        %620 = vmatpush2.msra.mxu0 0.0
        %621 = vmatprep.subr.mxu0 0.0
        %622 = vmatpush2.msra.mxu0 0.0
        %623 = vmatprep.subr.mxu0 0.0
        %624 = vmatpush2.msra.mxu0 0.0
        %625 = vmatprep.subr.mxu0 0.0
        %626 = vmatpush2.msra.mxu0 0.0
        %627 = vmatprep.mubr.f32.mxu0 0.0
        %628 = vmatmul.mubr.f32.gmra.mxu0 %v561
        %v629 = vpop.f32.mrf.mxu0
        %v630 = vadd.f32 0.0, %v629
        %v631 = vpop.f32.mrf.mxu0
        %v632 = vadd.f32 0.0, %v631
        %633 = vdwg.mxu0
        %v634 = vadd.f32 %v534, %v630
        %v635 = vadd.f32 %v535, %v632
        %636 = vrot.lane.b32.xlu0 %v427, 15
        %v637 = vpop.permute.xlu0 %636
        %638 = vrot.lane.b32.xlu0 %v428, 15
        %v639 = vpop.permute.xlu0 %638
        %vm640 = vcmp.lt.s32.totalorder %v440, 15
        %v641 = vsel %vm640, %v637, %v639
        %v642 = vsel %vm640, %v639, %v637
        %s643 = scalar_lea.vmem %s3, 4
        %v644 = vld [vmem:[%s643] sm:$0x3]
        %v646 = vlaneseq
        %v647 = vshrl.u32 %v646, 7
        %v648 = vsub.s32 0, %v647
        %v649 = vrot.slane %v644, %v648
        %v650 = vlaneseq
        %v651 = vshrl.u32 %v650, 7
        %v652 = vsub.s32 1, %v651
        %v653 = vrot.slane %v644, %v652
        %v656 = vmul.f32 %v642, %v649
        %v657 = vmul.f32 %v641, %v653
        %s658 = scalar_lea.vmem %s4, 8
        %v659 = vld [vmem:[%s658] sm:$0xf]
        %v661 = vsel %vm459, %v659, 0
        %663 = vmatprep.subr.mxu0 0.0
        %664 = vmatpush1.msra.mxu0 0.0
        %665 = vmatprep.subr.mxu0 0.0
        %666 = vmatpush1.msra.mxu0 0.0
        %667 = vmatprep.subr.mxu0 0.0
        %668 = vmatpush1.msra.mxu0 0.0
        %669 = vmatprep.subr.mxu0 0.0
        %670 = vmatpush1.msra.mxu0 0.0
        %671 = vmatprep.subr.mxu0 0.0
        %672 = vmatpush1.msra.mxu0 0.0
        %673 = vmatprep.subr.mxu0 0.0
        %674 = vmatpush1.msra.mxu0 0.0
        %675 = vmatprep.subr.mxu0 0.0
        %676 = vmatpush1.msra.mxu0 0.0
        %677 = vmatprep.subr.mxu0 0.0
        %678 = vmatpush1.msra.mxu0 0.0
        %679 = vmatprep.subr.mxu0 0.0
        %680 = vmatpush1.msra.mxu0 0.0
        %681 = vmatprep.subr.mxu0 0.0
        %682 = vmatpush1.msra.mxu0 0.0
        %683 = vmatprep.subr.mxu0 0.0
        %684 = vmatpush1.msra.mxu0 0.0
        %685 = vmatprep.subr.mxu0 0.0
        %686 = vmatpush1.msra.mxu0 0.0
        %687 = vmatprep.subr.mxu0 0.0
        %688 = vmatpush1.msra.mxu0 0.0
        %689 = vmatprep.subr.mxu0 0.0
        %690 = vmatpush1.msra.mxu0 0.0
        %691 = vmatprep.subr.mxu0 0.0
        %692 = vmatpush1.msra.mxu0 0.0
        %693 = vmatprep.subr.mxu0 %v657
        %694 = vmatpush1.msra.mxu0 %v656
        %695 = vmatprep.subr.mxu0 0.0
        %696 = vmatpush2.msra.mxu0 0.0
        %697 = vmatprep.subr.mxu0 0.0
        %698 = vmatpush2.msra.mxu0 0.0
        %699 = vmatprep.subr.mxu0 0.0
        %700 = vmatpush2.msra.mxu0 0.0
        %701 = vmatprep.subr.mxu0 0.0
        %702 = vmatpush2.msra.mxu0 0.0
        %703 = vmatprep.subr.mxu0 0.0
        %704 = vmatpush2.msra.mxu0 0.0
        %705 = vmatprep.subr.mxu0 0.0
        %706 = vmatpush2.msra.mxu0 0.0
        %707 = vmatprep.subr.mxu0 0.0
        %708 = vmatpush2.msra.mxu0 0.0
        %709 = vmatprep.subr.mxu0 0.0
        %710 = vmatpush2.msra.mxu0 0.0
        %711 = vmatprep.subr.mxu0 0.0
        %712 = vmatpush2.msra.mxu0 0.0
        %713 = vmatprep.subr.mxu0 0.0
        %714 = vmatpush2.msra.mxu0 0.0
        %715 = vmatprep.subr.mxu0 0.0
        %716 = vmatpush2.msra.mxu0 0.0
        %717 = vmatprep.subr.mxu0 0.0
        %718 = vmatpush2.msra.mxu0 0.0
        %719 = vmatprep.subr.mxu0 0.0
        %720 = vmatpush2.msra.mxu0 0.0
        %721 = vmatprep.subr.mxu0 0.0
        %722 = vmatpush2.msra.mxu0 0.0
        %723 = vmatprep.subr.mxu0 0.0
        %724 = vmatpush2.msra.mxu0 0.0
        %725 = vmatprep.subr.mxu0 0.0
        %726 = vmatpush2.msra.mxu0 0.0
        %727 = vmatprep.mubr.f32.mxu0 0.0
        %728 = vmatmul.mubr.f32.gmra.mxu0 %v661
        %v729 = vpop.f32.mrf.mxu0
        %v730 = vadd.f32 0.0, %v729
        %v731 = vpop.f32.mrf.mxu0
        %v732 = vadd.f32 0.0, %v731
        %733 = vdwg.mxu0
        %v734 = vadd.f32 %v634, %v730
        %v735 = vadd.f32 %v635, %v732
        %736 = vrot.lane.b32.xlu0 %v427, 1
        %v737 = vpop.permute.xlu0 %736
        %738 = vrot.lane.b32.xlu0 %v428, 1
        %v739 = vpop.permute.xlu0 %738
        %vm740 = vcmp.lt.s32.totalorder %v440, 1
        %v741 = vsel %vm740, %v737, %v739
        %v742 = vsel %vm740, %v739, %v737
        %s743 = scalar_lea.vmem %s3, 6
        %v744 = vld [vmem:[%s743] sm:$0x3]
        %v746 = vlaneseq
        %v747 = vshrl.u32 %v746, 7
        %v748 = vsub.s32 0, %v747
        %v749 = vrot.slane %v744, %v748
        %v750 = vlaneseq
        %v751 = vshrl.u32 %v750, 7
        %v752 = vsub.s32 1, %v751
        %v753 = vrot.slane %v744, %v752
        %v756 = vmul.f32 %v742, %v749
        %v757 = vmul.f32 %v741, %v753
        %s758 = scalar_lea.vmem %s4, 12
        %v759 = vld [vmem:[%s758] sm:$0xf]
        %v761 = vsel %vm459, %v759, 0
        %763 = vmatprep.subr.mxu0 0.0
        %764 = vmatpush1.msra.mxu0 0.0
        %765 = vmatprep.subr.mxu0 0.0
        %766 = vmatpush1.msra.mxu0 0.0
        %767 = vmatprep.subr.mxu0 0.0
        %768 = vmatpush1.msra.mxu0 0.0
        %769 = vmatprep.subr.mxu0 0.0
        %770 = vmatpush1.msra.mxu0 0.0
        %771 = vmatprep.subr.mxu0 0.0
        %772 = vmatpush1.msra.mxu0 0.0
        %773 = vmatprep.subr.mxu0 0.0
        %774 = vmatpush1.msra.mxu0 0.0
        %775 = vmatprep.subr.mxu0 0.0
        %776 = vmatpush1.msra.mxu0 0.0
        %777 = vmatprep.subr.mxu0 0.0
        %778 = vmatpush1.msra.mxu0 0.0
        %779 = vmatprep.subr.mxu0 0.0
        %780 = vmatpush1.msra.mxu0 0.0
        %781 = vmatprep.subr.mxu0 0.0
        %782 = vmatpush1.msra.mxu0 0.0
        %783 = vmatprep.subr.mxu0 0.0
        %784 = vmatpush1.msra.mxu0 0.0
        %785 = vmatprep.subr.mxu0 0.0
        %786 = vmatpush1.msra.mxu0 0.0
        %787 = vmatprep.subr.mxu0 0.0
        %788 = vmatpush1.msra.mxu0 0.0
        %789 = vmatprep.subr.mxu0 0.0
        %790 = vmatpush1.msra.mxu0 0.0
        %791 = vmatprep.subr.mxu0 0.0
        %792 = vmatpush1.msra.mxu0 0.0
        %793 = vmatprep.subr.mxu0 %v757
        %794 = vmatpush1.msra.mxu0 %v756
        %795 = vmatprep.subr.mxu0 0.0
        %796 = vmatpush2.msra.mxu0 0.0
        %797 = vmatprep.subr.mxu0 0.0
        %798 = vmatpush2.msra.mxu0 0.0
        %799 = vmatprep.subr.mxu0 0.0
        %800 = vmatpush2.msra.mxu0 0.0
        %801 = vmatprep.subr.mxu0 0.0
        %802 = vmatpush2.msra.mxu0 0.0
        %803 = vmatprep.subr.mxu0 0.0
        %804 = vmatpush2.msra.mxu0 0.0
        %805 = vmatprep.subr.mxu0 0.0
        %806 = vmatpush2.msra.mxu0 0.0
        %807 = vmatprep.subr.mxu0 0.0
        %808 = vmatpush2.msra.mxu0 0.0
        %809 = vmatprep.subr.mxu0 0.0
        %810 = vmatpush2.msra.mxu0 0.0
        %811 = vmatprep.subr.mxu0 0.0
        %812 = vmatpush2.msra.mxu0 0.0
        %813 = vmatprep.subr.mxu0 0.0
        %814 = vmatpush2.msra.mxu0 0.0
        %815 = vmatprep.subr.mxu0 0.0
        %816 = vmatpush2.msra.mxu0 0.0
        %817 = vmatprep.subr.mxu0 0.0
        %818 = vmatpush2.msra.mxu0 0.0
        %819 = vmatprep.subr.mxu0 0.0
        %820 = vmatpush2.msra.mxu0 0.0
        %821 = vmatprep.subr.mxu0 0.0
        %822 = vmatpush2.msra.mxu0 0.0
        %823 = vmatprep.subr.mxu0 0.0
        %824 = vmatpush2.msra.mxu0 0.0
        %825 = vmatprep.subr.mxu0 0.0
        %826 = vmatpush2.msra.mxu0 0.0
        %827 = vmatprep.mubr.f32.mxu0 0.0
        %828 = vmatmul.mubr.f32.gmra.mxu0 %v761
        %v829 = vpop.f32.mrf.mxu0
        %v830 = vadd.f32 0.0, %v829
        %v831 = vpop.f32.mrf.mxu0
        %v832 = vadd.f32 0.0, %v831
        %833 = vdwg.mxu0
        %v834 = vadd.f32 %v734, %v830
        %v835 = vadd.f32 %v735, %v832
        %s836 = scalar_lea.vmem %s4, 16
        %v837 = vld [vmem:[%s836] sm:$0xf]
        %v839 = vsel %vm459, %v837, 0
        %841 = vmatprep.subr.mxu0 0.0
        %842 = vmatpush1.msra.mxu0 0.0
        %843 = vmatprep.subr.mxu0 0.0
        %844 = vmatpush1.msra.mxu0 0.0
        %845 = vmatprep.subr.mxu0 0.0
        %846 = vmatpush1.msra.mxu0 0.0
        %847 = vmatprep.subr.mxu0 0.0
        %848 = vmatpush1.msra.mxu0 0.0
        %849 = vmatprep.subr.mxu0 0.0
        %850 = vmatpush1.msra.mxu0 0.0
        %851 = vmatprep.subr.mxu0 0.0
        %852 = vmatpush1.msra.mxu0 0.0
        %853 = vmatprep.subr.mxu0 0.0
        %854 = vmatpush1.msra.mxu0 0.0
        %855 = vmatprep.subr.mxu0 0.0
        %856 = vmatpush1.msra.mxu0 0.0
        %857 = vmatprep.subr.mxu0 0.0
        %858 = vmatpush1.msra.mxu0 0.0
        %859 = vmatprep.subr.mxu0 0.0
        %860 = vmatpush1.msra.mxu0 0.0
        %861 = vmatprep.subr.mxu0 0.0
        %862 = vmatpush1.msra.mxu0 0.0
        %863 = vmatprep.subr.mxu0 0.0
        %864 = vmatpush1.msra.mxu0 0.0
        %865 = vmatprep.subr.mxu0 0.0
        %866 = vmatpush1.msra.mxu0 0.0
        %867 = vmatprep.subr.mxu0 0.0
        %868 = vmatpush1.msra.mxu0 0.0
        %869 = vmatprep.subr.mxu0 0.0
        %870 = vmatpush1.msra.mxu0 0.0
        %871 = vmatprep.subr.mxu0 %v428
        %872 = vmatpush1.msra.mxu0 %v427
        %873 = vmatprep.subr.mxu0 0.0
        %874 = vmatpush2.msra.mxu0 0.0
        %875 = vmatprep.subr.mxu0 0.0
        %876 = vmatpush2.msra.mxu0 0.0
        %877 = vmatprep.subr.mxu0 0.0
        %878 = vmatpush2.msra.mxu0 0.0
        %879 = vmatprep.subr.mxu0 0.0
        %880 = vmatpush2.msra.mxu0 0.0
        %881 = vmatprep.subr.mxu0 0.0
        %882 = vmatpush2.msra.mxu0 0.0
        %883 = vmatprep.subr.mxu0 0.0
        %884 = vmatpush2.msra.mxu0 0.0
        %885 = vmatprep.subr.mxu0 0.0
        %886 = vmatpush2.msra.mxu0 0.0
        %887 = vmatprep.subr.mxu0 0.0
        %888 = vmatpush2.msra.mxu0 0.0
        %889 = vmatprep.subr.mxu0 0.0
        %890 = vmatpush2.msra.mxu0 0.0
        %891 = vmatprep.subr.mxu0 0.0
        %892 = vmatpush2.msra.mxu0 0.0
        %893 = vmatprep.subr.mxu0 0.0
        %894 = vmatpush2.msra.mxu0 0.0
        %895 = vmatprep.subr.mxu0 0.0
        %896 = vmatpush2.msra.mxu0 0.0
        %897 = vmatprep.subr.mxu0 0.0
        %898 = vmatpush2.msra.mxu0 0.0
        %899 = vmatprep.subr.mxu0 0.0
        %900 = vmatpush2.msra.mxu0 0.0
        %901 = vmatprep.subr.mxu0 0.0
        %902 = vmatpush2.msra.mxu0 0.0
        %903 = vmatprep.subr.mxu0 0.0
        %904 = vmatpush2.msra.mxu0 0.0
        %905 = vmatprep.mubr.f32.mxu0 0.0
        %906 = vmatmul.mubr.f32.gmra.mxu0 %v839
        %v907 = vpop.f32.mrf.mxu0
        %v908 = vadd.f32 0.0, %v907
        %v909 = vpop.f32.mrf.mxu0
        %v910 = vadd.f32 0.0, %v909
        %911 = vdwg.mxu0
        %v912 = vadd.f32 %v834, %v908
        %v913 = vadd.f32 %v835, %v910
        %914 = vrot.lane.b32.xlu0 %v427, 127
        %v915 = vpop.permute.xlu0 %914
        %916 = vrot.lane.b32.xlu0 %v428, 127
        %v917 = vpop.permute.xlu0 %916
        %vm918 = vcmp.lt.s32.totalorder %v440, 127
        %v919 = vsel %vm918, %v915, %v917
        %v920 = vsel %vm918, %v917, %v915
        %s921 = scalar_lea.vmem %s3, 10
        %v922 = vld [vmem:[%s921] sm:$0x3]
        %v924 = vlaneseq
        %v925 = vshrl.u32 %v924, 7
        %v926 = vsub.s32 0, %v925
        %v927 = vrot.slane %v922, %v926
        %v928 = vlaneseq
        %v929 = vshrl.u32 %v928, 7
        %v930 = vsub.s32 1, %v929
        %v931 = vrot.slane %v922, %v930
        %v934 = vmul.f32 %v919, %v927
        %v935 = vmul.f32 %v920, %v931
        %s936 = scalar_lea.vmem %s4, 20
        %v937 = vld [vmem:[%s936] sm:$0xf]
        %v939 = vsel %vm459, %v937, 0
        %941 = vmatprep.subr.mxu0 0.0
        %942 = vmatpush1.msra.mxu0 0.0
        %943 = vmatprep.subr.mxu0 0.0
        %944 = vmatpush1.msra.mxu0 0.0
        %945 = vmatprep.subr.mxu0 0.0
        %946 = vmatpush1.msra.mxu0 0.0
        %947 = vmatprep.subr.mxu0 0.0
        %948 = vmatpush1.msra.mxu0 0.0
        %949 = vmatprep.subr.mxu0 0.0
        %950 = vmatpush1.msra.mxu0 0.0
        %951 = vmatprep.subr.mxu0 0.0
        %952 = vmatpush1.msra.mxu0 0.0
        %953 = vmatprep.subr.mxu0 0.0
        %954 = vmatpush1.msra.mxu0 0.0
        %955 = vmatprep.subr.mxu0 0.0
        %956 = vmatpush1.msra.mxu0 0.0
        %957 = vmatprep.subr.mxu0 0.0
        %958 = vmatpush1.msra.mxu0 0.0
        %959 = vmatprep.subr.mxu0 0.0
        %960 = vmatpush1.msra.mxu0 0.0
        %961 = vmatprep.subr.mxu0 0.0
        %962 = vmatpush1.msra.mxu0 0.0
        %963 = vmatprep.subr.mxu0 0.0
        %964 = vmatpush1.msra.mxu0 0.0
        %965 = vmatprep.subr.mxu0 0.0
        %966 = vmatpush1.msra.mxu0 0.0
        %967 = vmatprep.subr.mxu0 0.0
        %968 = vmatpush1.msra.mxu0 0.0
        %969 = vmatprep.subr.mxu0 0.0
        %970 = vmatpush1.msra.mxu0 0.0
        %971 = vmatprep.subr.mxu0 %v935
        %972 = vmatpush1.msra.mxu0 %v934
        %973 = vmatprep.subr.mxu0 0.0
        %974 = vmatpush2.msra.mxu0 0.0
        %975 = vmatprep.subr.mxu0 0.0
        %976 = vmatpush2.msra.mxu0 0.0
        %977 = vmatprep.subr.mxu0 0.0
        %978 = vmatpush2.msra.mxu0 0.0
        %979 = vmatprep.subr.mxu0 0.0
        %980 = vmatpush2.msra.mxu0 0.0
        %981 = vmatprep.subr.mxu0 0.0
        %982 = vmatpush2.msra.mxu0 0.0
        %983 = vmatprep.subr.mxu0 0.0
        %984 = vmatpush2.msra.mxu0 0.0
        %985 = vmatprep.subr.mxu0 0.0
        %986 = vmatpush2.msra.mxu0 0.0
        %987 = vmatprep.subr.mxu0 0.0
        %988 = vmatpush2.msra.mxu0 0.0
        %989 = vmatprep.subr.mxu0 0.0
        %990 = vmatpush2.msra.mxu0 0.0
        %991 = vmatprep.subr.mxu0 0.0
        %992 = vmatpush2.msra.mxu0 0.0
        %993 = vmatprep.subr.mxu0 0.0
        %994 = vmatpush2.msra.mxu0 0.0
        %995 = vmatprep.subr.mxu0 0.0
        %996 = vmatpush2.msra.mxu0 0.0
        %997 = vmatprep.subr.mxu0 0.0
        %998 = vmatpush2.msra.mxu0 0.0
        %999 = vmatprep.subr.mxu0 0.0
        %1000 = vmatpush2.msra.mxu0 0.0
        %1001 = vmatprep.subr.mxu0 0.0
        %1002 = vmatpush2.msra.mxu0 0.0
        %1003 = vmatprep.subr.mxu0 0.0
        %1004 = vmatpush2.msra.mxu0 0.0
        %1005 = vmatprep.mubr.f32.mxu0 0.0
        %1006 = vmatmul.mubr.f32.gmra.mxu0 %v939
        %v1007 = vpop.f32.mrf.mxu0
        %v1008 = vadd.f32 0.0, %v1007
        %v1009 = vpop.f32.mrf.mxu0
        %v1010 = vadd.f32 0.0, %v1009
        %1011 = vdwg.mxu0
        %v1012 = vadd.f32 %v912, %v1008
        %v1013 = vadd.f32 %v913, %v1010
        %1014 = vrot.lane.b32.xlu0 %v427, 113
        %v1015 = vpop.permute.xlu0 %1014
        %1016 = vrot.lane.b32.xlu0 %v428, 113
        %v1017 = vpop.permute.xlu0 %1016
        %vm1018 = vcmp.lt.s32.totalorder %v440, 113
        %v1019 = vsel %vm1018, %v1015, %v1017
        %v1020 = vsel %vm1018, %v1017, %v1015
        %s1021 = scalar_lea.vmem %s3, 12
        %v1022 = vld [vmem:[%s1021] sm:$0x3]
        %v1024 = vlaneseq
        %v1025 = vshrl.u32 %v1024, 7
        %v1026 = vsub.s32 0, %v1025
        %v1027 = vrot.slane %v1022, %v1026
        %v1028 = vlaneseq
        %v1029 = vshrl.u32 %v1028, 7
        %v1030 = vsub.s32 1, %v1029
        %v1031 = vrot.slane %v1022, %v1030
        %v1034 = vmul.f32 %v1019, %v1027
        %v1035 = vmul.f32 %v1020, %v1031
        %s1036 = scalar_lea.vmem %s4, 24
        %v1037 = vld [vmem:[%s1036] sm:$0xf]
        %v1039 = vsel %vm459, %v1037, 0
        %1041 = vmatprep.subr.mxu0 0.0
        %1042 = vmatpush1.msra.mxu0 0.0
        %1043 = vmatprep.subr.mxu0 0.0
        %1044 = vmatpush1.msra.mxu0 0.0
        %1045 = vmatprep.subr.mxu0 0.0
        %1046 = vmatpush1.msra.mxu0 0.0
        %1047 = vmatprep.subr.mxu0 0.0
        %1048 = vmatpush1.msra.mxu0 0.0
        %1049 = vmatprep.subr.mxu0 0.0
        %1050 = vmatpush1.msra.mxu0 0.0
        %1051 = vmatprep.subr.mxu0 0.0
        %1052 = vmatpush1.msra.mxu0 0.0
        %1053 = vmatprep.subr.mxu0 0.0
        %1054 = vmatpush1.msra.mxu0 0.0
        %1055 = vmatprep.subr.mxu0 0.0
        %1056 = vmatpush1.msra.mxu0 0.0
        %1057 = vmatprep.subr.mxu0 0.0
        %1058 = vmatpush1.msra.mxu0 0.0
        %1059 = vmatprep.subr.mxu0 0.0
        %1060 = vmatpush1.msra.mxu0 0.0
        %1061 = vmatprep.subr.mxu0 0.0
        %1062 = vmatpush1.msra.mxu0 0.0
        %1063 = vmatprep.subr.mxu0 0.0
        %1064 = vmatpush1.msra.mxu0 0.0
        %1065 = vmatprep.subr.mxu0 0.0
        %1066 = vmatpush1.msra.mxu0 0.0
        %1067 = vmatprep.subr.mxu0 0.0
        %1068 = vmatpush1.msra.mxu0 0.0
        %1069 = vmatprep.subr.mxu0 0.0
        %1070 = vmatpush1.msra.mxu0 0.0
        %1071 = vmatprep.subr.mxu0 %v1035
        %1072 = vmatpush1.msra.mxu0 %v1034
        %1073 = vmatprep.subr.mxu0 0.0
        %1074 = vmatpush2.msra.mxu0 0.0
        %1075 = vmatprep.subr.mxu0 0.0
        %1076 = vmatpush2.msra.mxu0 0.0
        %1077 = vmatprep.subr.mxu0 0.0
        %1078 = vmatpush2.msra.mxu0 0.0
        %1079 = vmatprep.subr.mxu0 0.0
        %1080 = vmatpush2.msra.mxu0 0.0
        %1081 = vmatprep.subr.mxu0 0.0
        %1082 = vmatpush2.msra.mxu0 0.0
        %1083 = vmatprep.subr.mxu0 0.0
        %1084 = vmatpush2.msra.mxu0 0.0
        %1085 = vmatprep.subr.mxu0 0.0
        %1086 = vmatpush2.msra.mxu0 0.0
        %1087 = vmatprep.subr.mxu0 0.0
        %1088 = vmatpush2.msra.mxu0 0.0
        %1089 = vmatprep.subr.mxu0 0.0
        %1090 = vmatpush2.msra.mxu0 0.0
        %1091 = vmatprep.subr.mxu0 0.0
        %1092 = vmatpush2.msra.mxu0 0.0
        %1093 = vmatprep.subr.mxu0 0.0
        %1094 = vmatpush2.msra.mxu0 0.0
        %1095 = vmatprep.subr.mxu0 0.0
        %1096 = vmatpush2.msra.mxu0 0.0
        %1097 = vmatprep.subr.mxu0 0.0
        %1098 = vmatpush2.msra.mxu0 0.0
        %1099 = vmatprep.subr.mxu0 0.0
        %1100 = vmatpush2.msra.mxu0 0.0
        %1101 = vmatprep.subr.mxu0 0.0
        %1102 = vmatpush2.msra.mxu0 0.0
        %1103 = vmatprep.subr.mxu0 0.0
        %1104 = vmatpush2.msra.mxu0 0.0
        %1105 = vmatprep.mubr.f32.mxu0 0.0
        %1106 = vmatmul.mubr.f32.gmra.mxu0 %v1039
        %v1107 = vpop.f32.mrf.mxu0
        %v1108 = vadd.f32 0.0, %v1107
        %v1109 = vpop.f32.mrf.mxu0
        %v1110 = vadd.f32 0.0, %v1109
        %1111 = vdwg.mxu0
        %v1112 = vadd.f32 %v1012, %v1108
        %v1113 = vadd.f32 %v1013, %v1110
        %1114 = vrot.lane.b32.xlu0 %v427, 112
        %v1115 = vpop.permute.xlu0 %1114
        %1116 = vrot.lane.b32.xlu0 %v428, 112
        %v1117 = vpop.permute.xlu0 %1116
        %vm1118 = vcmp.lt.s32.totalorder %v440, 112
        %v1119 = vsel %vm1118, %v1115, %v1117
        %v1120 = vsel %vm1118, %v1117, %v1115
        %s1121 = scalar_lea.vmem %s3, 14
        %v1122 = vld [vmem:[%s1121] sm:$0x3]
        %v1124 = vlaneseq
        %v1125 = vshrl.u32 %v1124, 7
        %v1126 = vsub.s32 0, %v1125
        %v1127 = vrot.slane %v1122, %v1126
        %v1128 = vlaneseq
        %v1129 = vshrl.u32 %v1128, 7
        %v1130 = vsub.s32 1, %v1129
        %v1131 = vrot.slane %v1122, %v1130
        %v1134 = vmul.f32 %v1119, %v1127
        %v1135 = vmul.f32 %v1120, %v1131
        %s1136 = scalar_lea.vmem %s4, 28
        %v1137 = vld [vmem:[%s1136] sm:$0xf]
        %v1139 = vsel %vm459, %v1137, 0
        %1141 = vmatprep.subr.mxu0 0.0
        %1142 = vmatpush1.msra.mxu0 0.0
        %1143 = vmatprep.subr.mxu0 0.0
        %1144 = vmatpush1.msra.mxu0 0.0
        %1145 = vmatprep.subr.mxu0 0.0
        %1146 = vmatpush1.msra.mxu0 0.0
        %1147 = vmatprep.subr.mxu0 0.0
        %1148 = vmatpush1.msra.mxu0 0.0
        %1149 = vmatprep.subr.mxu0 0.0
        %1150 = vmatpush1.msra.mxu0 0.0
        %1151 = vmatprep.subr.mxu0 0.0
        %1152 = vmatpush1.msra.mxu0 0.0
        %1153 = vmatprep.subr.mxu0 0.0
        %1154 = vmatpush1.msra.mxu0 0.0
        %1155 = vmatprep.subr.mxu0 0.0
        %1156 = vmatpush1.msra.mxu0 0.0
        %1157 = vmatprep.subr.mxu0 0.0
        %1158 = vmatpush1.msra.mxu0 0.0
        %1159 = vmatprep.subr.mxu0 0.0
        %1160 = vmatpush1.msra.mxu0 0.0
        %1161 = vmatprep.subr.mxu0 0.0
        %1162 = vmatpush1.msra.mxu0 0.0
        %1163 = vmatprep.subr.mxu0 0.0
        %1164 = vmatpush1.msra.mxu0 0.0
        %1165 = vmatprep.subr.mxu0 0.0
        %1166 = vmatpush1.msra.mxu0 0.0
        %1167 = vmatprep.subr.mxu0 0.0
        %1168 = vmatpush1.msra.mxu0 0.0
        %1169 = vmatprep.subr.mxu0 0.0
        %1170 = vmatpush1.msra.mxu0 0.0
        %1171 = vmatprep.subr.mxu0 %v1135
        %1172 = vmatpush1.msra.mxu0 %v1134
        %1173 = vmatprep.subr.mxu0 0.0
        %1174 = vmatpush2.msra.mxu0 0.0
        %1175 = vmatprep.subr.mxu0 0.0
        %1176 = vmatpush2.msra.mxu0 0.0
        %1177 = vmatprep.subr.mxu0 0.0
        %1178 = vmatpush2.msra.mxu0 0.0
        %1179 = vmatprep.subr.mxu0 0.0
        %1180 = vmatpush2.msra.mxu0 0.0
        %1181 = vmatprep.subr.mxu0 0.0
        %1182 = vmatpush2.msra.mxu0 0.0
        %1183 = vmatprep.subr.mxu0 0.0
        %1184 = vmatpush2.msra.mxu0 0.0
        %1185 = vmatprep.subr.mxu0 0.0
        %1186 = vmatpush2.msra.mxu0 0.0
        %1187 = vmatprep.subr.mxu0 0.0
        %1188 = vmatpush2.msra.mxu0 0.0
        %1189 = vmatprep.subr.mxu0 0.0
        %1190 = vmatpush2.msra.mxu0 0.0
        %1191 = vmatprep.subr.mxu0 0.0
        %1192 = vmatpush2.msra.mxu0 0.0
        %1193 = vmatprep.subr.mxu0 0.0
        %1194 = vmatpush2.msra.mxu0 0.0
        %1195 = vmatprep.subr.mxu0 0.0
        %1196 = vmatpush2.msra.mxu0 0.0
        %1197 = vmatprep.subr.mxu0 0.0
        %1198 = vmatpush2.msra.mxu0 0.0
        %1199 = vmatprep.subr.mxu0 0.0
        %1200 = vmatpush2.msra.mxu0 0.0
        %1201 = vmatprep.subr.mxu0 0.0
        %1202 = vmatpush2.msra.mxu0 0.0
        %1203 = vmatprep.subr.mxu0 0.0
        %1204 = vmatpush2.msra.mxu0 0.0
        %1205 = vmatprep.mubr.f32.mxu0 0.0
        %1206 = vmatmul.mubr.f32.gmra.mxu0 %v1139
        %v1207 = vpop.f32.mrf.mxu0
        %v1208 = vadd.f32 0.0, %v1207
        %v1209 = vpop.f32.mrf.mxu0
        %v1210 = vadd.f32 0.0, %v1209
        %1211 = vdwg.mxu0
        %v1212 = vadd.f32 %v1112, %v1208
        %v1213 = vadd.f32 %v1113, %v1210
        %1214 = vrot.lane.b32.xlu0 %v427, 111
        %v1215 = vpop.permute.xlu0 %1214
        %1216 = vrot.lane.b32.xlu0 %v428, 111
        %v1217 = vpop.permute.xlu0 %1216
        %vm1218 = vcmp.lt.s32.totalorder %v440, 111
        %v1219 = vsel %vm1218, %v1215, %v1217
        %v1220 = vsel %vm1218, %v1217, %v1215
        %s1221 = scalar_lea.vmem %s3, 16
        %v1222 = vld [vmem:[%s1221] sm:$0x3]
        %v1224 = vlaneseq
        %v1225 = vshrl.u32 %v1224, 7
        %v1226 = vsub.s32 0, %v1225
        %v1227 = vrot.slane %v1222, %v1226
        %v1228 = vlaneseq
        %v1229 = vshrl.u32 %v1228, 7
        %v1230 = vsub.s32 1, %v1229
        %v1231 = vrot.slane %v1222, %v1230
        %v1234 = vmul.f32 %v1219, %v1227
        %v1235 = vmul.f32 %v1220, %v1231
        %s1236 = scalar_lea.vmem %s4, 32
        %v1237 = vld [vmem:[%s1236] sm:$0xf]
        %v1239 = vsel %vm459, %v1237, 0
        %1241 = vmatprep.subr.mxu0 0.0
        %1242 = vmatpush1.msra.mxu0 0.0
        %1243 = vmatprep.subr.mxu0 0.0
        %1244 = vmatpush1.msra.mxu0 0.0
        %1245 = vmatprep.subr.mxu0 0.0
        %1246 = vmatpush1.msra.mxu0 0.0
        %1247 = vmatprep.subr.mxu0 0.0
        %1248 = vmatpush1.msra.mxu0 0.0
        %1249 = vmatprep.subr.mxu0 0.0
        %1250 = vmatpush1.msra.mxu0 0.0
        %1251 = vmatprep.subr.mxu0 0.0
        %1252 = vmatpush1.msra.mxu0 0.0
        %1253 = vmatprep.subr.mxu0 0.0
        %1254 = vmatpush1.msra.mxu0 0.0
        %1255 = vmatprep.subr.mxu0 0.0
        %1256 = vmatpush1.msra.mxu0 0.0
        %1257 = vmatprep.subr.mxu0 0.0
        %1258 = vmatpush1.msra.mxu0 0.0
        %1259 = vmatprep.subr.mxu0 0.0
        %1260 = vmatpush1.msra.mxu0 0.0
        %1261 = vmatprep.subr.mxu0 0.0
        %1262 = vmatpush1.msra.mxu0 0.0
        %1263 = vmatprep.subr.mxu0 0.0
        %1264 = vmatpush1.msra.mxu0 0.0
        %1265 = vmatprep.subr.mxu0 0.0
        %1266 = vmatpush1.msra.mxu0 0.0
        %1267 = vmatprep.subr.mxu0 0.0
        %1268 = vmatpush1.msra.mxu0 0.0
        %1269 = vmatprep.subr.mxu0 0.0
        %1270 = vmatpush1.msra.mxu0 0.0
        %1271 = vmatprep.subr.mxu0 %v1235
        %1272 = vmatpush1.msra.mxu0 %v1234
        %1273 = vmatprep.subr.mxu0 0.0
        %1274 = vmatpush2.msra.mxu0 0.0
        %1275 = vmatprep.subr.mxu0 0.0
        %1276 = vmatpush2.msra.mxu0 0.0
        %1277 = vmatprep.subr.mxu0 0.0
        %1278 = vmatpush2.msra.mxu0 0.0
        %1279 = vmatprep.subr.mxu0 0.0
        %1280 = vmatpush2.msra.mxu0 0.0
        %1281 = vmatprep.subr.mxu0 0.0
        %1282 = vmatpush2.msra.mxu0 0.0
        %1283 = vmatprep.subr.mxu0 0.0
        %1284 = vmatpush2.msra.mxu0 0.0
        %1285 = vmatprep.subr.mxu0 0.0
        %1286 = vmatpush2.msra.mxu0 0.0
        %1287 = vmatprep.subr.mxu0 0.0
        %1288 = vmatpush2.msra.mxu0 0.0
        %1289 = vmatprep.subr.mxu0 0.0
        %1290 = vmatpush2.msra.mxu0 0.0
        %1291 = vmatprep.subr.mxu0 0.0
        %1292 = vmatpush2.msra.mxu0 0.0
        %1293 = vmatprep.subr.mxu0 0.0
        %1294 = vmatpush2.msra.mxu0 0.0
        %1295 = vmatprep.subr.mxu0 0.0
        %1296 = vmatpush2.msra.mxu0 0.0
        %1297 = vmatprep.subr.mxu0 0.0
        %1298 = vmatpush2.msra.mxu0 0.0
        %1299 = vmatprep.subr.mxu0 0.0
        %1300 = vmatpush2.msra.mxu0 0.0
        %1301 = vmatprep.subr.mxu0 0.0
        %1302 = vmatpush2.msra.mxu0 0.0
        %1303 = vmatprep.subr.mxu0 0.0
        %1304 = vmatpush2.msra.mxu0 0.0
        %1305 = vmatprep.mubr.f32.mxu0 0.0
        %1306 = vmatmul.mubr.f32.gmra.mxu0 %v1239
        %v1307 = vpop.f32.mrf.mxu0
        %v1308 = vadd.f32 0.0, %v1307
        %v1309 = vpop.f32.mrf.mxu0
        %v1310 = vadd.f32 0.0, %v1309
        %1311 = vdwg.mxu0
        %v1312 = vadd.f32 %v1212, %v1308
        %v1313 = vadd.f32 %v1213, %v1310
        %v1316 = vcombine.low %v1312, %v1313
        %1318 = vst [vmem:[%s272] sm:$0xff] %v1316
        %s1319 = sand.u32 %s165, 1
        %s1320 = scalar_lea.sflag [#allocation4], %s1319
        %s1321 = sand.u32 %s165, 1
        %s1322 = smul.addr %s1321, 8
        %s1323 = scalar_lea.vmem [#allocation5], %s1322
        // Predicated region
        $region49: #{tpu_custom_call.1} parent=43 // pred_check
          %p1324 = pneg %p175
        $region50: #{tpu_custom_call.1} parent=43 // pred_check_branch
          %1326 = sbr.rel (%p1324) target = $region52
        $region51: #{tpu_custom_call.1} parent=43 // pred_region
          %s1328 = ssub.s32 128, 128
          %1329 = vsyncadd %s1320, %s1328
          %s1330 = smul.addr %s21, 2
          %s1331 = smul.addr %s1330, 64
          %s1332 = scalar_lea.hbm %s6, %s1331
          %s1334 = sshll.u32 %s1323, 4
          %s1335 = int_to_ptr.vmem [resolvable:$true] %s1334
          %1337 = dma.vmem_to_hbm [thread:$0]  %s1335, 128, %s1332, %s1320
        $region52: #{tpu_custom_call.1} parent=43 // pred_fallthru
          _
      $region44: #{tpu_custom_call.1} parent=5 // pred_fallthru
        _
      %p1338 = scmp.le.s32.totalorder 2, %s16
      // Predicated region
      $region53: #{tpu_custom_call.1} parent=5 // pred_check
        %p1339 = pneg %p1338
      $region54: #{tpu_custom_call.1} parent=5 // pred_check_branch
        %1341 = sbr.rel (%p1339) target = $region56
      $region55: #{tpu_custom_call.1} parent=5 // pred_region
        %s1342 = ssub.s32 %s16, 2
        // Predicated region
        $region57: #{tpu_custom_call.1} parent=55 // pred_check
          %p1343 = pneg %p181
        $region58: #{tpu_custom_call.1} parent=55 // pred_check_branch
          %1345 = sbr.rel (%p1343) target = $region60
        $region59: #{tpu_custom_call.1} parent=55 // pred_region
          %s1346 = sand.u32 %s166, 1
          %s1347 = scalar_lea.sflag [#allocation4], %s1346
          %s1348 = sand.u32 %s166, 1
          %s1349 = smul.addr %s1348, 8
          %s1350 = scalar_lea.vmem [#allocation5], %s1349
          %1351 = dma.done %s1347, 128
        $region60: #{tpu_custom_call.1} parent=55 // pred_fallthru
          _
      $region56: #{tpu_custom_call.1} parent=5 // pred_fallthru
        _
    $region6: #{tpu_custom_call.1} parent=1 // loop_footer
      %s20 = sadd.s32 1, %s16
    $region7: #{tpu_custom_call.1} parent=1 // loop_footer_branch
      %15 = sbr.rel target = $region3
    $region8: #{tpu_custom_call.1} parent=1 // loop_exit
      _
    %1352 = vsyncpa [#allocation3], 1
    %s1353 = scalar_lea.sflag [#allocation3], 1
    %1354 = vsyncpa %s1353, 1
    %1355 = vsyncpa [#allocation4], 1
    %s1356 = scalar_lea.sflag [#allocation4], 1
    %1357 = vsyncpa %s1356, 1

</llo_original>
